<compile_context>
chip_gen: v7x
topology: tpu7x:2x2x1
jax: 0.10.0
libtpu: 0.0.40
codegen_flags: <defaults>
</compile_context>

<pallas_src>
import functools

import jax
import jax.numpy as jnp
from jax.experimental import pallas as pl
from jax.experimental.pallas import tpu as pltpu


# Raised scoped-VMEM budget: well above the defaults (16 MiB v5e / 32 MiB v6e,v7x),
# comfortably below v7x's 64 MiB physical VMEM.
_VMEM_LIMIT_BYTES = 48 * 1024 * 1024
_BLOCK_TARGET_F32_BYTES = 4 << 20  # ~4 MiB f32-equivalent per input per block.


def _kd_ce_rows_kernel(s_ref, t_ref, o_ref, *, inv_temp, n_rows, row_tile):
    """2-D path: blocks are (row_tile, C); class dim on the lane axis."""
    i = pl.program_id(0)

    # Temperature-scaled logits, computed in f32 regardless of input dtype.
    s = s_ref[...].astype(jnp.float32) * inv_temp          # (row_tile, C)
    t = t_ref[...].astype(jnp.float32) * inv_temp          # (row_tile, C)

    # Teacher softmax numerator / denominator (probabilities never materialized).
    t_max = jnp.max(t, axis=-1, keepdims=True)              # (row_tile, 1)
    t_exp = jnp.exp(t - t_max)                               # (row_tile, C)
    t_sum = jnp.sum(t_exp, axis=-1, keepdims=True)           # (row_tile, 1)

    # Student log-sum-exp.
    s_max = jnp.max(s, axis=-1, keepdims=True)
    s_sum = jnp.sum(jnp.exp(s - s_max), axis=-1, keepdims=True)
    lse = s_max + jnp.log(s_sum)                              # (row_tile, 1)

    # CE with soft targets: lse - sum_c p_c * s_c, with p = t_exp / t_sum.
    dot_num = jnp.sum(t_exp * s, axis=-1, keepdims=True)
    row_loss = lse - dot_num / t_sum                          # (row_tile, 1)

    # Mask tail rows of a partial last block (also drops NaN/Inf from padded rows).
    row_ids = i * row_tile + jax.lax.broadcasted_iota(jnp.int32, row_loss.shape, 0)
    row_loss = jnp.where(row_ids < n_rows, row_loss, jnp.float32(0.0))

    # One cheap cross-sublane reduce per step (XLU has slack); no running accumulator.
    partial = jnp.sum(row_loss)
    o_ref[...] = jnp.broadcast_to(partial, o_ref.shape)       # one (8,128) vreg store


def _kd_ce_chw_kernel(s_ref, t_ref, o_ref, *, inv_temp, n_cols, col_tile):
    """ND path: blocks are (1, C, col_tile); class dim on the sublane axis."""
    j = pl.program_id(1)

    s = s_ref[...].astype(jnp.float32) * inv_temp            # (1, C, col_tile)
    t = t_ref[...].astype(jnp.float32) * inv_temp

    t_max = jnp.max(t, axis=1, keepdims=True)                 # (1, 1, col_tile)
    t_exp = jnp.exp(t - t_max)                                 # (1, C, col_tile)
    t_sum = jnp.sum(t_exp, axis=1, keepdims=True)

    s_max = jnp.max(s, axis=1, keepdims=True)
    s_sum = jnp.sum(jnp.exp(s - s_max), axis=1, keepdims=True)
    lse = s_max + jnp.log(s_sum)                               # (1, 1, col_tile)

    dot_num = jnp.sum(t_exp * s, axis=1, keepdims=True)
    col_loss = lse - dot_num / t_sum                           # (1, 1, col_tile)

    # Mask tail columns of a partial last block along the spatial axis.
    col_ids = j * col_tile + jax.lax.broadcasted_iota(jnp.int32, col_loss.shape, 2)
    col_loss = jnp.where(col_ids < n_cols, col_loss, jnp.float32(0.0))

    partial = jnp.sum(col_loss)
    o_ref[...] = jnp.broadcast_to(partial, o_ref.shape)


def _choose_row_tile(n_rows, n_classes, sub):
    per_row_f32 = n_classes * 4
    t = (_BLOCK_TARGET_F32_BYTES // max(1, per_row_f32) // sub) * sub
    t = max(sub, t)
    if t >= n_rows:
        return n_rows              # single block equal to the full axis (always valid)
    return t                        # multiple of `sub`; partial last block is masked


def _choose_col_tile(n_cols, n_classes):
    per_col_f32 = n_classes * 4
    t = (_BLOCK_TARGET_F32_BYTES // max(1, per_col_f32) // 128) * 128
    t = max(128, t)
    if t >= n_cols:
        return n_cols              # single block equal to the full axis (always valid)
    return t                        # multiple of 128; partial last block is masked


def kd_ce_loss(student_logits, teacher_logits, temperature, *, row_tile=None):
    """Pallas TPU implementation of _KDComponentWithCE.forward."""
    assert student_logits.shape == teacher_logits.shape
    assert student_logits.ndim >= 2

    shape = student_logits.shape
    itemsize = jnp.dtype(student_logits.dtype).itemsize
    # Sublane packing granularity: f32 -> 8, bf16 -> 16, int8/fp8 -> 32.
    sub = {4: 8, 2: 16, 1: 32}.get(itemsize, 8)
    T = float(temperature)
    inv_temp = 1.0 / T

    if student_logits.ndim == 2:
        # ---- 2-D path: (rows, C), class dim already last (lane axis). ----
        n_rows, n_classes = shape

        if row_tile is None:
            row_tile = _choose_row_tile(n_rows, n_classes, sub)
        else:
            row_tile = max(1, int(row_tile))
            if row_tile >= n_rows:
                row_tile = n_rows
            else:
                row_tile = max(sub, (row_tile // sub) * sub)

        grid0 = pl.cdiv(n_rows, row_tile)
        total = n_rows * n_classes
        cost = pl.CostEstimate(
            flops=8 * total,
            transcendentals=2 * total + 2 * n_rows,
            bytes_accessed=2 * total * itemsize + grid0 * 8 * 128 * 4,
        )
        kernel = functools.partial(
            _kd_ce_rows_kernel, inv_temp=inv_temp, n_rows=n_rows, row_tile=row_tile)

        partials = pl.pallas_call(
            kernel,
            out_shape=jax.ShapeDtypeStruct((grid0, 8, 128), jnp.float32),
            grid_spec=pltpu.PrefetchScalarGridSpec(
                num_scalar_prefetch=0,
                grid=(grid0,),
                in_specs=[
                    pl.BlockSpec((row_tile, n_classes), lambda i: (i, 0)),
                    pl.BlockSpec((row_tile, n_classes), lambda i: (i, 0)),
                ],
                out_specs=pl.BlockSpec((1, 8, 128), lambda i: (i, 0, 0)),
            ),
            compiler_params=pltpu.CompilerParams(
                dimension_semantics=("parallel",),
                vmem_limit_bytes=_VMEM_LIMIT_BYTES,
            ),
            cost_estimate=cost,
        )(student_logits, teacher_logits)

        n_positions = n_rows
        total_loss = jnp.sum(partials[:, 0, 0])
    else:
        # ---- ND path: (N, C, d1, d2, ...), class dim = dim 1 stays on sublanes. ----
        n_batch, n_classes = shape[0], shape[1]
        n_cols = 1
        for d in shape[2:]:
            n_cols *= int(d)
        # Collapsing trailing contiguous dims is a free (layout-preserving) reshape;
        # no transpose / extra HBM pass over the inputs.
        s3 = student_logits.reshape(n_batch, n_classes, n_cols)
        t3 = teacher_logits.reshape(n_batch, n_classes, n_cols)

        col_tile = _choose_col_tile(n_cols, n_classes)
        grid_s = pl.cdiv(n_cols, col_tile)

        total = n_batch * n_classes * n_cols
        cost = pl.CostEstimate(
            flops=8 * total,
            transcendentals=2 * total + 2 * n_batch * n_cols,
            bytes_accessed=2 * total * itemsize + n_batch * grid_s * 8 * 128 * 4,
        )
        kernel = functools.partial(
            _kd_ce_chw_kernel, inv_temp=inv_temp, n_cols=n_cols, col_tile=col_tile)

        partials = pl.pallas_call(
            kernel,
            out_shape=jax.ShapeDtypeStruct((n_batch, grid_s, 8, 128), jnp.float32),
            grid_spec=pltpu.PrefetchScalarGridSpec(
                num_scalar_prefetch=0,
                grid=(n_batch, grid_s),
                in_specs=[
                    pl.BlockSpec((1, n_classes, col_tile), lambda n, j: (n, 0, j)),
                    pl.BlockSpec((1, n_classes, col_tile), lambda n, j: (n, 0, j)),
                ],
                out_specs=pl.BlockSpec((1, 1, 8, 128), lambda n, j: (n, j, 0, 0)),
            ),
            compiler_params=pltpu.CompilerParams(
                dimension_semantics=("parallel", "parallel"),
                vmem_limit_bytes=_VMEM_LIMIT_BYTES,
            ),
            cost_estimate=cost,
        )(s3, t3)

        n_positions = n_batch * n_cols
        total_loss = jnp.sum(partials[:, :, 0, 0])

    scale = T * T / float(n_positions)
    return total_loss * jnp.float32(scale)


if __name__ == "__main__":
    key = jax.random.PRNGKey(0)
    k1, k2, k3, k4 = jax.random.split(key, 4)

    temperature = 2.0
    T = temperature

    def reference(s, t):
        log_q = jax.nn.log_softmax(s / T, axis=1)
        p = jax.nn.softmax(t / T, axis=1)
        return -jnp.mean(jnp.sum(p * log_q, axis=1)) * T * T

    # 2-D KD logits: batch NOT a multiple of the row tile -> exercises the tail mask
    # and the multi-block "parallel" partial-sum path (row_tile=128 -> 3 grid steps).
    batch, vocab = 300, 512
    s2 = jax.random.normal(k1, (batch, vocab), dtype=jnp.float32)
    t2 = jax.random.normal(k2, (batch, vocab), dtype=jnp.float32)
    loss2 = jax.block_until_ready(kd_ce_loss(s2, t2, temperature, row_tile=128))
    ref2 = reference(s2, t2)
    assert jnp.allclose(loss2, ref2, rtol=1e-5, atol=1e-6), (loss2, ref2)

    # 4-D conv-style logits: class dim is dim 1 and stays on the sublane axis in the
    # kernel, so no wrapper transpose is performed.
    s4 = jax.random.normal(k3, (2, 4, 16, 16), dtype=jnp.float32)
    t4 = jax.random.normal(k4, (2, 4, 16, 16), dtype=jnp.float32)
    loss4 = jax.block_until_ready(kd_ce_loss(s4, t4, temperature))
    ref4 = reference(s4, t4)
    assert jnp.allclose(loss4, ref4, rtol=1e-5, atol=1e-6), (loss4, ref4)

    print("KERNEL_OK")
</pallas_src>

<mosaic_0001>
module attributes {stable_mosaic.version = 11 : i64} {
  func.func @_kd_ce_rows_kernel(%arg0: i32, %arg1: memref<128x512xf32, #tpu.memory_space<vmem>>, %arg2: memref<128x512xf32, #tpu.memory_space<vmem>>, %arg3: memref<1x8x128xf32, #tpu.memory_space<vmem>>) attributes {dimension_semantics = [#tpu.dimension_semantics<parallel>], iteration_bounds = array<i64: 3>, scalar_prefetch = 0 : i64, scratch_operands = 0 : i64, tpu.core_type = #tpu.core_type<tc>, window_params = [{transform_indices = @transform_0, window_bounds = array<i64: 128, 512>}, {transform_indices = @transform_1, window_bounds = array<i64: 128, 512>}, {transform_indices = @transform_2, window_bounds = array<i64: 1, 8, 128>}]} {
    %c0 = arith.constant 0 : index
    %c0_0 = arith.constant 0 : index
    %0 = vector.load %arg1[%c0, %c0_0] : memref<128x512xf32, #tpu.memory_space<vmem>>, vector<128x512xf32>
    %cst = arith.constant 5.000000e-01 : f32
    %1 = vector.broadcast %cst : f32 to vector<128x512xf32>
    %2 = arith.mulf %0, %1 : vector<128x512xf32>
    %c0_1 = arith.constant 0 : index
    %c0_2 = arith.constant 0 : index
    %3 = vector.load %arg2[%c0_1, %c0_2] : memref<128x512xf32, #tpu.memory_space<vmem>>, vector<128x512xf32>
    %cst_3 = arith.constant 5.000000e-01 : f32
    %4 = vector.broadcast %cst_3 : f32 to vector<128x512xf32>
    %5 = arith.mulf %3, %4 : vector<128x512xf32>
    %cst_4 = arith.constant dense<0xFF800000> : vector<128xf32>
    %6 = vector.multi_reduction <maximumf>, %5, %cst_4 [1] : vector<128x512xf32> to vector<128xf32>
    %7 = vector.shape_cast %6 : vector<128xf32> to vector<128x1xf32>
    %8 = vector.broadcast %7 : vector<128x1xf32> to vector<128x512xf32>
    %9 = arith.subf %5, %8 : vector<128x512xf32>
    %10 = math.exp %9 : vector<128x512xf32>
    %cst_5 = arith.constant dense<0.000000e+00> : vector<128xf32>
    %11 = vector.multi_reduction <add>, %10, %cst_5 [1] : vector<128x512xf32> to vector<128xf32>
    %12 = vector.shape_cast %11 : vector<128xf32> to vector<128x1xf32>
    %cst_6 = arith.constant dense<0xFF800000> : vector<128xf32>
    %13 = vector.multi_reduction <maximumf>, %2, %cst_6 [1] : vector<128x512xf32> to vector<128xf32>
    %14 = vector.shape_cast %13 : vector<128xf32> to vector<128x1xf32>
    %15 = vector.broadcast %14 : vector<128x1xf32> to vector<128x512xf32>
    %16 = arith.subf %2, %15 : vector<128x512xf32>
    %17 = math.exp %16 : vector<128x512xf32>
    %cst_7 = arith.constant dense<0.000000e+00> : vector<128xf32>
    %18 = vector.multi_reduction <add>, %17, %cst_7 [1] : vector<128x512xf32> to vector<128xf32>
    %19 = vector.shape_cast %18 : vector<128xf32> to vector<128x1xf32>
    %20 = math.log %19 : vector<128x1xf32>
    %21 = arith.addf %14, %20 : vector<128x1xf32>
    %22 = arith.mulf %10, %2 : vector<128x512xf32>
    %cst_8 = arith.constant dense<0.000000e+00> : vector<128xf32>
    %23 = vector.multi_reduction <add>, %22, %cst_8 [1] : vector<128x512xf32> to vector<128xf32>
    %24 = vector.shape_cast %23 : vector<128xf32> to vector<128x1xf32>
    %25 = arith.divf %24, %12 : vector<128x1xf32>
    %26 = arith.subf %21, %25 : vector<128x1xf32>
    %c128_i32 = arith.constant 128 : i32
    %27 = arith.muli %arg0, %c128_i32 : i32
    %28 = tpu.iota {dimensions = array<i32: 0>} : vector<128x1xi32>
    %29 = vector.broadcast %27 : i32 to vector<128x1xi32>
    %30 = arith.addi %29, %28 : vector<128x1xi32>
    %c300_i32 = arith.constant 300 : i32
    %31 = vector.broadcast %c300_i32 : i32 to vector<128x1xi32>
    %32 = arith.cmpi slt, %30, %31 : vector<128x1xi32>
    %cst_9 = arith.constant 0.000000e+00 : f32
    %33 = vector.broadcast %cst_9 : f32 to vector<128x1xf32>
    %34 = arith.select %32, %26, %33 : vector<128x1xi1>, vector<128x1xf32>
    %35 = vector.shape_cast %34 : vector<128x1xf32> to vector<1x128x1xf32>
    %cst_10 = arith.constant dense<0.000000e+00> : vector<1xf32>
    %36 = vector.multi_reduction <add>, %35, %cst_10 [1, 2] : vector<1x128x1xf32> to vector<1xf32>
    %37 = vector.shape_cast %36 : vector<1xf32> to vector<1x1x1xf32>
    %38 = vector.extract %37[0, 0, 0] : f32 from vector<1x1x1xf32>
    %39 = vector.broadcast %38 : f32 to vector<1x8x128xf32>
    %c0_11 = arith.constant 0 : index
    %c0_12 = arith.constant 0 : index
    %c0_13 = arith.constant 0 : index
    %40 = vector.load %arg3[%c0_11, %c0_12, %c0_13] : memref<1x8x128xf32, #tpu.memory_space<vmem>>, vector<1x8x128xf32>
    tpu.vector_store %arg3[%c0_11, %c0_12, %c0_13], %39 {strides = array<i32>} : memref<1x8x128xf32, #tpu.memory_space<vmem>>, vector<1x8x128xf32>,
    return
  }
  func.func @transform_0(%arg0: i32) -> (i32, i32) {
    %c0_i32 = arith.constant 0 : i32
    %c0_i32_0 = arith.constant 0 : i32
    return %arg0, %c0_i32 : i32, i32
  }
  func.func @transform_1(%arg0: i32) -> (i32, i32) {
    %c0_i32 = arith.constant 0 : i32
    %c0_i32_0 = arith.constant 0 : i32
    return %arg0, %c0_i32 : i32, i32
  }
  func.func @transform_2(%arg0: i32) -> (i32, i32, i32) {
    %c0_i32 = arith.constant 0 : i32
    %c0_i32_0 = arith.constant 0 : i32
    %c0_i32_1 = arith.constant 0 : i32
    return %arg0, %c0_i32, %c0_i32_0 : i32, i32, i32
  }
}

</mosaic_0001>

<llo_original>
// kernel: tpu_custom_call.1
$region0: #{tpu_custom_call.1}
  #allocation0 [shape = 'u32[]', space=smem, size = 0x4, offset = 0x4, fixed_abs, tag = 'smem constant byte address 0x4 - core index']
  #allocation1 [shape = 'u32[144,128]{1,0:T(1,128)}', space=vmem, size = 0x12000, scoped, tag = 'internal scratch']
  %s0 = inlined_call_operand.hbm [shape: f32[300,512], index: 0, kind: input, shape index: {}]
  %s1 = inlined_call_operand.hbm [shape: f32[300,512], index: 1, kind: input, shape index: {}]
  %s2 = inlined_call_operand.hbm [shape: f32[3,8,128], index: 2, kind: output, shape index: {}]
  %s3 = sld [smem:[#allocation0]]
  $region49: #{tpu_custom_call.1} parent=0
    _
  %s5 = ssub.s32 1, %s3
  %s6 = scalar_select 0, %s5, %s3
  $region1: #{tpu_custom_call.1} parent=0
    #allocation2 [shape = 'u8[524288]{0}', space=vmem, size = 0x80000, scoped, tag = 'input window, operand 0']
    #allocation3 [shape = 's32[2]{0}', space=sflag, size = 0x8, scoped, tag = 'scoped memory for tpu_custom_call.1']
    #allocation4 [shape = 's32[2]{0}', space=sflag, size = 0x8, scoped, tag = 'scoped memory for tpu_custom_call.1']
    #allocation5 [shape = 'u8[524288]{0}', space=vmem, size = 0x80000, scoped, tag = 'input window, operand 1']
    #allocation6 [shape = 's32[2]{0}', space=sflag, size = 0x8, scoped, tag = 'scoped memory for tpu_custom_call.1']
    #allocation7 [shape = 'u8[8192]{0}', space=vmem, size = 0x2000, scoped, tag = 'output window, operand 0']
    %7 = vsyncpa [#allocation3], 0
    %s8 = scalar_lea.sflag [#allocation3], 1
    %9 = vsyncpa %s8, 0
    %10 = vsyncpa [#allocation6], 0
    %s11 = scalar_lea.sflag [#allocation6], 1
    %12 = vsyncpa %s11, 0
    %13 = vsyncpa [#allocation4], 0
    %s14 = scalar_lea.sflag [#allocation4], 1
    %15 = vsyncpa %s14, 0
    loop: start=0, step=1, limit=5
    $region2: #{tpu_custom_call.1} parent=1 // loop_pre_header
      _
    $region3: #{tpu_custom_call.1} parent=1 // loop_header
      %s17 = sphi 0, %s21
      %p18 = scmp.ge.s32.totalorder %s17, 5
      %s27 = sphi 0, %s29
      %s30 = sphi 0, %s27
      %s31 = sphi 0, %s30
      %s47 = sphi 0, %s31
      %s53 = sphi 0, %s55
      %s56 = sphi 0, %s53
      %s57 = sphi 0, %s56
      %s73 = sphi 0, %s57
      %s79 = sphi 0, %s81
      %s82 = sphi 0, %s79
      %s83 = sphi 0, %s82
      %s99 = sphi 0, %s83
    $region4: #{tpu_custom_call.1} parent=1 // loop_header_branch
      %20 = sbr.rel (%p18) target = $region8
    $region5: #{tpu_custom_call.1} parent=1 // loop_body
      %s22 = ssub.s32 %s17, 1
      %s23 = ssub.s32 %s17, 2
      %s24 = sadd.s32 %s17, 1
      %s25 = ssub.s32 %s17, %s24
      %p26 = scmp.eq.s32.totalorder %s25, 0
      %s28 = sadd.s32 %s27, 1
      %s29 = scalar_select %p26, %s27, %s28
      %p32 = pneg %p26
      %p33 = scmp.eq.s32.totalorder %s17, 2
      %p34 = por %p32, %p33
      %p35 = scmp.ne.s32.totalorder %s27, %s30
      %p36 = scmp.eq.s32.totalorder %s17, 0
      %p37 = por %p35, %p36
      %p38 = scmp.ne.s32.totalorder %s27, %s30
      %p39 = scmp.eq.s32.totalorder %s22, 2
      %p40 = por %p38, %p39
      %p41 = scmp.ne.s32.totalorder %s30, %s31
      %p42 = scmp.eq.s32.totalorder %s22, 0
      %p43 = por %p41, %p42
      %p44 = scmp.ne.s32.totalorder %s30, %s31
      %p45 = scmp.eq.s32.totalorder %s23, 2
      %p46 = por %p44, %p45
      %p48 = scmp.ne.s32.totalorder %s31, %s47
      %p49 = scmp.eq.s32.totalorder %s23, 0
      %p50 = por %p48, %p49
      %s51 = ssub.s32 %s17, %s24
      %p52 = scmp.eq.s32.totalorder %s51, 0
      %s54 = sadd.s32 %s53, 1
      %s55 = scalar_select %p52, %s53, %s54
      %p58 = pneg %p52
      %p59 = scmp.eq.s32.totalorder %s17, 2
      %p60 = por %p58, %p59
      %p61 = scmp.ne.s32.totalorder %s53, %s56
      %p62 = scmp.eq.s32.totalorder %s17, 0
      %p63 = por %p61, %p62
      %p64 = scmp.ne.s32.totalorder %s53, %s56
      %p65 = scmp.eq.s32.totalorder %s22, 2
      %p66 = por %p64, %p65
      %p67 = scmp.ne.s32.totalorder %s56, %s57
      %p68 = scmp.eq.s32.totalorder %s22, 0
      %p69 = por %p67, %p68
      %p70 = scmp.ne.s32.totalorder %s56, %s57
      %p71 = scmp.eq.s32.totalorder %s23, 2
      %p72 = por %p70, %p71
      %p74 = scmp.ne.s32.totalorder %s57, %s73
      %p75 = scmp.eq.s32.totalorder %s23, 0
      %p76 = por %p74, %p75
      %s77 = ssub.s32 %s17, %s24
      %p78 = scmp.eq.s32.totalorder %s77, 0
      %s80 = sadd.s32 %s79, 1
      %s81 = scalar_select %p78, %s79, %s80
      %p84 = pneg %p78
      %p85 = scmp.eq.s32.totalorder %s17, 2
      %p86 = por %p84, %p85
      %p87 = scmp.ne.s32.totalorder %s79, %s82
      %p88 = scmp.eq.s32.totalorder %s17, 0
      %p89 = por %p87, %p88
      %p90 = scmp.ne.s32.totalorder %s79, %s82
      %p91 = scmp.eq.s32.totalorder %s22, 2
      %p92 = por %p90, %p91
      %p93 = scmp.ne.s32.totalorder %s82, %s83
      %p94 = scmp.eq.s32.totalorder %s22, 0
      %p95 = por %p93, %p94
      %p96 = scmp.ne.s32.totalorder %s82, %s83
      %p97 = scmp.eq.s32.totalorder %s23, 2
      %p98 = por %p96, %p97
      %p100 = scmp.ne.s32.totalorder %s83, %s99
      %p101 = scmp.eq.s32.totalorder %s23, 0
      %p102 = por %p100, %p101
      %p103 = scmp.le.s32.totalorder 1, %s17
      %p104 = scmp.lt.s32.totalorder %s17, 4
      %p105 = pnand %p103, %p104
      %p106 = pneg %p105
      // Predicated region
      $region9: #{tpu_custom_call.1} parent=5 // pred_check
        _
      $region10: #{tpu_custom_call.1} parent=5 // pred_check_branch
        %108 = sbr.rel (%p105) target = $region12
      $region11: #{tpu_custom_call.1} parent=5 // pred_region
        %s109 = ssub.s32 %s17, 1
      $region12: #{tpu_custom_call.1} parent=5 // pred_fallthru
        _
      %p110 = scmp.lt.s32.totalorder %s17, 3
      // Predicated region
      $region13: #{tpu_custom_call.1} parent=5 // pred_check
        %p111 = pneg %p110
      $region14: #{tpu_custom_call.1} parent=5 // pred_check_branch
        %113 = sbr.rel (%p111) target = $region16
      $region15: #{tpu_custom_call.1} parent=5 // pred_region
        // Predicated region
        $region17: #{tpu_custom_call.1} parent=15 // pred_check
          %p114 = pneg %p37
        $region18: #{tpu_custom_call.1} parent=15 // pred_check_branch
          %116 = sbr.rel (%p114) target = $region20
        $region19: #{tpu_custom_call.1} parent=15 // pred_region
          %s117 = sand.u32 %s27, 1
          %s118 = scalar_lea.sflag [#allocation3], %s117
          %s119 = sand.u32 %s27, 1
          %s120 = smul.addr %s119, 512
          %s121 = scalar_lea.vmem [#allocation2], %s120
          %s122 = smul.u32 16, %s17
          %s123 = ssub.s32 38, %s122
          %p124 = scmp.lt.s32.totalorder %s123, 16
          %s125 = scalar_select %p124, %s123, 16
          %s126 = smul.u32 128, %s125
          %s127 = smul.u32 %s126, 4
          %s129 = ssub.s32 8192, %s127
          %130 = vsyncadd %s118, %s129
          %p131 = scmp.ne.s32.totalorder 0, %s127
          %s132 = smul.addr %s122, 4
          %s133 = smul.addr %s132, 128
          %s134 = scalar_lea.hbm %s0, %s133
          %s135 = smul.u32 32, %s125
          %s136 = sshll.u32 %s121, 4
          %s137 = int_to_ptr.vmem [resolvable:$true] %s136
          %s138 = sshll.u32 %s135, 4
          %142 = dma.hbm_to_vmem [thread:$0]  (%p131), %s134, %s138, %s137, %s118, 512, 512, 32
        $region20: #{tpu_custom_call.1} parent=15 // pred_fallthru
          _
        // Predicated region
        $region21: #{tpu_custom_call.1} parent=15 // pred_check
          %p143 = pneg %p63
        $region22: #{tpu_custom_call.1} parent=15 // pred_check_branch
          %145 = sbr.rel (%p143) target = $region24
        $region23: #{tpu_custom_call.1} parent=15 // pred_region
          %s146 = sand.u32 %s53, 1
          %s147 = scalar_lea.sflag [#allocation6], %s146
          %s148 = sand.u32 %s53, 1
          %s149 = smul.addr %s148, 512
          %s150 = scalar_lea.vmem [#allocation5], %s149
          %s151 = smul.u32 16, %s17
          %s152 = ssub.s32 38, %s151
          %p153 = scmp.lt.s32.totalorder %s152, 16
          %s154 = scalar_select %p153, %s152, 16
          %s155 = smul.u32 128, %s154
          %s156 = smul.u32 %s155, 4
          %s158 = ssub.s32 8192, %s156
          %159 = vsyncadd %s147, %s158
          %p160 = scmp.ne.s32.totalorder 0, %s156
          %s161 = smul.addr %s151, 4
          %s162 = smul.addr %s161, 128
          %s163 = scalar_lea.hbm %s1, %s162
          %s164 = smul.u32 32, %s154
          %s165 = sshll.u32 %s150, 4
          %s166 = int_to_ptr.vmem [resolvable:$true] %s165
          %s167 = sshll.u32 %s164, 4
          %171 = dma.hbm_to_vmem [thread:$0]  (%p160), %s163, %s167, %s166, %s147, 512, 512, 32
        $region24: #{tpu_custom_call.1} parent=15 // pred_fallthru
          _
      $region16: #{tpu_custom_call.1} parent=5 // pred_fallthru
        _
      %p172 = scmp.le.s32.totalorder 1, %s17
      %p173 = scmp.lt.s32.totalorder %s17, 4
      %p174 = pnand %p172, %p173
      %p175 = pneg %p174
      // Predicated region
      $region25: #{tpu_custom_call.1} parent=5 // pred_check
        _
      $region26: #{tpu_custom_call.1} parent=5 // pred_check_branch
        %177 = sbr.rel (%p174) target = $region28
      $region27: #{tpu_custom_call.1} parent=5 // pred_region
        %s178 = ssub.s32 %s17, 1
        %s179 = sand.u32 %s30, 1
        %s180 = scalar_lea.sflag [#allocation3], %s179
        %s181 = sand.u32 %s30, 1
        %s182 = smul.addr %s181, 512
        %s183 = scalar_lea.vmem [#allocation2], %s182
        // Predicated region
        $region29: #{tpu_custom_call.1} parent=27 // pred_check
          %p184 = pneg %p43
        $region30: #{tpu_custom_call.1} parent=27 // pred_check_branch
          %186 = sbr.rel (%p184) target = $region32
        $region31: #{tpu_custom_call.1} parent=27 // pred_region
          %187 = dma.done %s180, 8192
        $region32: #{tpu_custom_call.1} parent=27 // pred_fallthru
          _
        %s188 = sand.u32 %s56, 1
        %s189 = scalar_lea.sflag [#allocation6], %s188
        %s190 = sand.u32 %s56, 1
        %s191 = smul.addr %s190, 512
        %s192 = scalar_lea.vmem [#allocation5], %s191
        // Predicated region
        $region33: #{tpu_custom_call.1} parent=27 // pred_check
          %p193 = pneg %p69
        $region34: #{tpu_custom_call.1} parent=27 // pred_check_branch
          %195 = sbr.rel (%p193) target = $region36
        $region35: #{tpu_custom_call.1} parent=27 // pred_region
          %196 = dma.done %s189, 8192
        $region36: #{tpu_custom_call.1} parent=27 // pred_fallthru
          _
        %s197 = sand.u32 %s30, 1
        %s198 = scalar_lea.sflag [#allocation3], %s197
        %s199 = sand.u32 %s30, 1
        %s200 = smul.addr %s199, 512
        %s201 = scalar_lea.vmem [#allocation2], %s200
        %p202 = pneg %p43
        %p203 = pneg %p40
        %s204 = sand.u32 %s56, 1
        %s205 = scalar_lea.sflag [#allocation6], %s204
        %s206 = sand.u32 %s56, 1
        %s207 = smul.addr %s206, 512
        %s208 = scalar_lea.vmem [#allocation5], %s207
        %p209 = pneg %p69
        %p210 = pneg %p66
        %p211 = pneg %p95
        %p212 = pneg %p92
        %s213 = sand.u32 %s82, 1
        %s214 = scalar_lea.sflag [#allocation4], %s213
        %s215 = sand.u32 %s82, 1
        %s216 = smul.addr %s215, 8
        %s217 = scalar_lea.vmem [#allocation7], %s216
        %s218 = smul.u32 16, %s22
        %s219 = ssub.s32 38, %s218
        %p220 = scmp.lt.s32.totalorder %s219, 16
        %s221 = scalar_select %p220, %s219, 16
        %s222 = smul.u32 128, %s221
        %s223 = smul.u32 %s222, 4
        %s224 = smul.u32 16, %s22
        %s225 = ssub.s32 38, %s224
        %p226 = scmp.lt.s32.totalorder %s225, 16
        %s227 = scalar_select %p226, %s225, 16
        %s228 = smul.u32 128, %s227
        %s229 = smul.u32 %s228, 4
        %v230 = vld [vmem:[%s183] sm:$0xff]
        %v231 = vld [vmem:[%s183 + $0x8] sm:$0xff]
        %v232 = vld [vmem:[%s183 + $0x10] sm:$0xff]
        %v233 = vld [vmem:[%s183 + $0x18] sm:$0xff]
        %v234 = vld [vmem:[%s183 + $0x20] sm:$0xff]
        %v235 = vld [vmem:[%s183 + $0x28] sm:$0xff]
        %v236 = vld [vmem:[%s183 + $0x30] sm:$0xff]
        %v237 = vld [vmem:[%s183 + $0x38] sm:$0xff]
        %v238 = vld [vmem:[%s183 + $0x40] sm:$0xff]
        %v239 = vld [vmem:[%s183 + $0x48] sm:$0xff]
        %v240 = vld [vmem:[%s183 + $0x50] sm:$0xff]
        %v241 = vld [vmem:[%s183 + $0x58] sm:$0xff]
        %v242 = vld [vmem:[%s183 + $0x60] sm:$0xff]
        %v243 = vld [vmem:[%s183 + $0x68] sm:$0xff]
        %v244 = vld [vmem:[%s183 + $0x70] sm:$0xff]
        %v245 = vld [vmem:[%s183 + $0x78] sm:$0xff]
        %v246 = vld [vmem:[%s183 + $0x80] sm:$0xff]
        %v247 = vld [vmem:[%s183 + $0x88] sm:$0xff]
        %v248 = vld [vmem:[%s183 + $0x90] sm:$0xff]
        %v249 = vld [vmem:[%s183 + $0x98] sm:$0xff]
        %v250 = vld [vmem:[%s183 + $0xa0] sm:$0xff]
        %v251 = vld [vmem:[%s183 + $0xa8] sm:$0xff]
        %v252 = vld [vmem:[%s183 + $0xb0] sm:$0xff]
        %v253 = vld [vmem:[%s183 + $0xb8] sm:$0xff]
        %v254 = vld [vmem:[%s183 + $0xc0] sm:$0xff]
        %v255 = vld [vmem:[%s183 + $0xc8] sm:$0xff]
        %v256 = vld [vmem:[%s183 + $0xd0] sm:$0xff]
        %v257 = vld [vmem:[%s183 + $0xd8] sm:$0xff]
        %v258 = vld [vmem:[%s183 + $0xe0] sm:$0xff]
        %v259 = vld [vmem:[%s183 + $0xe8] sm:$0xff]
        %v260 = vld [vmem:[%s183 + $0xf0] sm:$0xff]
        %v261 = vld [vmem:[%s183 + $0xf8] sm:$0xff]
        %v262 = vld [vmem:[%s183 + $0x100] sm:$0xff]
        %v263 = vld [vmem:[%s183 + $0x108] sm:$0xff]
        %v264 = vld [vmem:[%s183 + $0x110] sm:$0xff]
        %v265 = vld [vmem:[%s183 + $0x118] sm:$0xff]
        %v266 = vld [vmem:[%s183 + $0x120] sm:$0xff]
        %v267 = vld [vmem:[%s183 + $0x128] sm:$0xff]
        %v268 = vld [vmem:[%s183 + $0x130] sm:$0xff]
        %v269 = vld [vmem:[%s183 + $0x138] sm:$0xff]
        %v270 = vld [vmem:[%s183 + $0x140] sm:$0xff]
        %v271 = vld [vmem:[%s183 + $0x148] sm:$0xff]
        %v272 = vld [vmem:[%s183 + $0x150] sm:$0xff]
        %v273 = vld [vmem:[%s183 + $0x158] sm:$0xff]
        %v274 = vld [vmem:[%s183 + $0x160] sm:$0xff]
        %v275 = vld [vmem:[%s183 + $0x168] sm:$0xff]
        %v276 = vld [vmem:[%s183 + $0x170] sm:$0xff]
        %v277 = vld [vmem:[%s183 + $0x178] sm:$0xff]
        %v278 = vld [vmem:[%s183 + $0x180] sm:$0xff]
        %v279 = vld [vmem:[%s183 + $0x188] sm:$0xff]
        %v280 = vld [vmem:[%s183 + $0x190] sm:$0xff]
        %v281 = vld [vmem:[%s183 + $0x198] sm:$0xff]
        %v282 = vld [vmem:[%s183 + $0x1a0] sm:$0xff]
        %v283 = vld [vmem:[%s183 + $0x1a8] sm:$0xff]
        %v284 = vld [vmem:[%s183 + $0x1b0] sm:$0xff]
        %v285 = vld [vmem:[%s183 + $0x1b8] sm:$0xff]
        %v286 = vld [vmem:[%s183 + $0x1c0] sm:$0xff]
        %v287 = vld [vmem:[%s183 + $0x1c8] sm:$0xff]
        %v288 = vld [vmem:[%s183 + $0x1d0] sm:$0xff]
        %v289 = vld [vmem:[%s183 + $0x1d8] sm:$0xff]
        %v290 = vld [vmem:[%s183 + $0x1e0] sm:$0xff]
        %v291 = vld [vmem:[%s183 + $0x1e8] sm:$0xff]
        %v292 = vld [vmem:[%s183 + $0x1f0] sm:$0xff]
        %v293 = vld [vmem:[%s183 + $0x1f8] sm:$0xff]
        %v294 = vmul.f32 %v230, 0.5
        %v295 = vmul.f32 %v231, 0.5
        %v296 = vmul.f32 %v232, 0.5
        %v297 = vmul.f32 %v233, 0.5
        %v298 = vmul.f32 %v234, 0.5
        %v299 = vmul.f32 %v235, 0.5
        %v300 = vmul.f32 %v236, 0.5
        %v301 = vmul.f32 %v237, 0.5
        %v302 = vmul.f32 %v238, 0.5
        %v303 = vmul.f32 %v239, 0.5
        %v304 = vmul.f32 %v240, 0.5
        %v305 = vmul.f32 %v241, 0.5
        %v306 = vmul.f32 %v242, 0.5
        %v307 = vmul.f32 %v243, 0.5
        %v308 = vmul.f32 %v244, 0.5
        %v309 = vmul.f32 %v245, 0.5
        %v310 = vmul.f32 %v246, 0.5
        %v311 = vmul.f32 %v247, 0.5
        %v312 = vmul.f32 %v248, 0.5
        %v313 = vmul.f32 %v249, 0.5
        %v314 = vmul.f32 %v250, 0.5
        %v315 = vmul.f32 %v251, 0.5
        %v316 = vmul.f32 %v252, 0.5
        %v317 = vmul.f32 %v253, 0.5
        %v318 = vmul.f32 %v254, 0.5
        %v319 = vmul.f32 %v255, 0.5
        %v320 = vmul.f32 %v256, 0.5
        %v321 = vmul.f32 %v257, 0.5
        %v322 = vmul.f32 %v258, 0.5
        %v323 = vmul.f32 %v259, 0.5
        %v324 = vmul.f32 %v260, 0.5
        %v325 = vmul.f32 %v261, 0.5
        %v326 = vmul.f32 %v262, 0.5
        %v327 = vmul.f32 %v263, 0.5
        %v328 = vmul.f32 %v264, 0.5
        %v329 = vmul.f32 %v265, 0.5
        %v330 = vmul.f32 %v266, 0.5
        %v331 = vmul.f32 %v267, 0.5
        %v332 = vmul.f32 %v268, 0.5
        %v333 = vmul.f32 %v269, 0.5
        %v334 = vmul.f32 %v270, 0.5
        %v335 = vmul.f32 %v271, 0.5
        %v336 = vmul.f32 %v272, 0.5
        %v337 = vmul.f32 %v273, 0.5
        %v338 = vmul.f32 %v274, 0.5
        %v339 = vmul.f32 %v275, 0.5
        %v340 = vmul.f32 %v276, 0.5
        %v341 = vmul.f32 %v277, 0.5
        %v342 = vmul.f32 %v278, 0.5
        %v343 = vmul.f32 %v279, 0.5
        %v344 = vmul.f32 %v280, 0.5
        %v345 = vmul.f32 %v281, 0.5
        %v346 = vmul.f32 %v282, 0.5
        %v347 = vmul.f32 %v283, 0.5
        %v348 = vmul.f32 %v284, 0.5
        %v349 = vmul.f32 %v285, 0.5
        %v350 = vmul.f32 %v286, 0.5
        %v351 = vmul.f32 %v287, 0.5
        %v352 = vmul.f32 %v288, 0.5
        %v353 = vmul.f32 %v289, 0.5
        %v354 = vmul.f32 %v290, 0.5
        %v355 = vmul.f32 %v291, 0.5
        %v356 = vmul.f32 %v292, 0.5
        %v357 = vmul.f32 %v293, 0.5
        %v358 = vld [vmem:[%s192] sm:$0xff]
        %v359 = vld [vmem:[%s192 + $0x8] sm:$0xff]
        %v360 = vld [vmem:[%s192 + $0x10] sm:$0xff]
        %v361 = vld [vmem:[%s192 + $0x18] sm:$0xff]
        %v362 = vld [vmem:[%s192 + $0x20] sm:$0xff]
        %v363 = vld [vmem:[%s192 + $0x28] sm:$0xff]
        %v364 = vld [vmem:[%s192 + $0x30] sm:$0xff]
        %v365 = vld [vmem:[%s192 + $0x38] sm:$0xff]
        %v366 = vld [vmem:[%s192 + $0x40] sm:$0xff]
        %v367 = vld [vmem:[%s192 + $0x48] sm:$0xff]
        %v368 = vld [vmem:[%s192 + $0x50] sm:$0xff]
        %v369 = vld [vmem:[%s192 + $0x58] sm:$0xff]
        %v370 = vld [vmem:[%s192 + $0x60] sm:$0xff]
        %v371 = vld [vmem:[%s192 + $0x68] sm:$0xff]
        %v372 = vld [vmem:[%s192 + $0x70] sm:$0xff]
        %v373 = vld [vmem:[%s192 + $0x78] sm:$0xff]
        %v374 = vld [vmem:[%s192 + $0x80] sm:$0xff]
        %v375 = vld [vmem:[%s192 + $0x88] sm:$0xff]
        %v376 = vld [vmem:[%s192 + $0x90] sm:$0xff]
        %v377 = vld [vmem:[%s192 + $0x98] sm:$0xff]
        %v378 = vld [vmem:[%s192 + $0xa0] sm:$0xff]
        %v379 = vld [vmem:[%s192 + $0xa8] sm:$0xff]
        %v380 = vld [vmem:[%s192 + $0xb0] sm:$0xff]
        %v381 = vld [vmem:[%s192 + $0xb8] sm:$0xff]
        %v382 = vld [vmem:[%s192 + $0xc0] sm:$0xff]
        %v383 = vld [vmem:[%s192 + $0xc8] sm:$0xff]
        %v384 = vld [vmem:[%s192 + $0xd0] sm:$0xff]
        %v385 = vld [vmem:[%s192 + $0xd8] sm:$0xff]
        %v386 = vld [vmem:[%s192 + $0xe0] sm:$0xff]
        %v387 = vld [vmem:[%s192 + $0xe8] sm:$0xff]
        %v388 = vld [vmem:[%s192 + $0xf0] sm:$0xff]
        %v389 = vld [vmem:[%s192 + $0xf8] sm:$0xff]
        %v390 = vld [vmem:[%s192 + $0x100] sm:$0xff]
        %v391 = vld [vmem:[%s192 + $0x108] sm:$0xff]
        %v392 = vld [vmem:[%s192 + $0x110] sm:$0xff]
        %v393 = vld [vmem:[%s192 + $0x118] sm:$0xff]
        %v394 = vld [vmem:[%s192 + $0x120] sm:$0xff]
        %v395 = vld [vmem:[%s192 + $0x128] sm:$0xff]
        %v396 = vld [vmem:[%s192 + $0x130] sm:$0xff]
        %v397 = vld [vmem:[%s192 + $0x138] sm:$0xff]
        %v398 = vld [vmem:[%s192 + $0x140] sm:$0xff]
        %v399 = vld [vmem:[%s192 + $0x148] sm:$0xff]
        %v400 = vld [vmem:[%s192 + $0x150] sm:$0xff]
        %v401 = vld [vmem:[%s192 + $0x158] sm:$0xff]
        %v402 = vld [vmem:[%s192 + $0x160] sm:$0xff]
        %v403 = vld [vmem:[%s192 + $0x168] sm:$0xff]
        %v404 = vld [vmem:[%s192 + $0x170] sm:$0xff]
        %v405 = vld [vmem:[%s192 + $0x178] sm:$0xff]
        %v406 = vld [vmem:[%s192 + $0x180] sm:$0xff]
        %v407 = vld [vmem:[%s192 + $0x188] sm:$0xff]
        %v408 = vld [vmem:[%s192 + $0x190] sm:$0xff]
        %v409 = vld [vmem:[%s192 + $0x198] sm:$0xff]
        %v410 = vld [vmem:[%s192 + $0x1a0] sm:$0xff]
        %v411 = vld [vmem:[%s192 + $0x1a8] sm:$0xff]
        %v412 = vld [vmem:[%s192 + $0x1b0] sm:$0xff]
        %v413 = vld [vmem:[%s192 + $0x1b8] sm:$0xff]
        %v414 = vld [vmem:[%s192 + $0x1c0] sm:$0xff]
        %v415 = vld [vmem:[%s192 + $0x1c8] sm:$0xff]
        %v416 = vld [vmem:[%s192 + $0x1d0] sm:$0xff]
        %v417 = vld [vmem:[%s192 + $0x1d8] sm:$0xff]
        %v418 = vld [vmem:[%s192 + $0x1e0] sm:$0xff]
        %v419 = vld [vmem:[%s192 + $0x1e8] sm:$0xff]
        %v420 = vld [vmem:[%s192 + $0x1f0] sm:$0xff]
        %v421 = vld [vmem:[%s192 + $0x1f8] sm:$0xff]
        %v422 = vmul.f32 %v358, 0.5
        %v423 = vmul.f32 %v359, 0.5
        %v424 = vmul.f32 %v360, 0.5
        %v425 = vmul.f32 %v361, 0.5
        %v426 = vmul.f32 %v362, 0.5
        %v427 = vmul.f32 %v363, 0.5
        %v428 = vmul.f32 %v364, 0.5
        %v429 = vmul.f32 %v365, 0.5
        %v430 = vmul.f32 %v366, 0.5
        %v431 = vmul.f32 %v367, 0.5
        %v432 = vmul.f32 %v368, 0.5
        %v433 = vmul.f32 %v369, 0.5
        %v434 = vmul.f32 %v370, 0.5
        %v435 = vmul.f32 %v371, 0.5
        %v436 = vmul.f32 %v372, 0.5
        %v437 = vmul.f32 %v373, 0.5
        %v438 = vmul.f32 %v374, 0.5
        %v439 = vmul.f32 %v375, 0.5
        %v440 = vmul.f32 %v376, 0.5
        %v441 = vmul.f32 %v377, 0.5
        %v442 = vmul.f32 %v378, 0.5
        %v443 = vmul.f32 %v379, 0.5
        %v444 = vmul.f32 %v380, 0.5
        %v445 = vmul.f32 %v381, 0.5
        %v446 = vmul.f32 %v382, 0.5
        %v447 = vmul.f32 %v383, 0.5
        %v448 = vmul.f32 %v384, 0.5
        %v449 = vmul.f32 %v385, 0.5
        %v450 = vmul.f32 %v386, 0.5
        %v451 = vmul.f32 %v387, 0.5
        %v452 = vmul.f32 %v388, 0.5
        %v453 = vmul.f32 %v389, 0.5
        %v454 = vmul.f32 %v390, 0.5
        %v455 = vmul.f32 %v391, 0.5
        %v456 = vmul.f32 %v392, 0.5
        %v457 = vmul.f32 %v393, 0.5
        %v458 = vmul.f32 %v394, 0.5
        %v459 = vmul.f32 %v395, 0.5
        %v460 = vmul.f32 %v396, 0.5
        %v461 = vmul.f32 %v397, 0.5
        %v462 = vmul.f32 %v398, 0.5
        %v463 = vmul.f32 %v399, 0.5
        %v464 = vmul.f32 %v400, 0.5
        %v465 = vmul.f32 %v401, 0.5
        %v466 = vmul.f32 %v402, 0.5
        %v467 = vmul.f32 %v403, 0.5
        %v468 = vmul.f32 %v404, 0.5
        %v469 = vmul.f32 %v405, 0.5
        %v470 = vmul.f32 %v406, 0.5
        %v471 = vmul.f32 %v407, 0.5
        %v472 = vmul.f32 %v408, 0.5
        %v473 = vmul.f32 %v409, 0.5
        %v474 = vmul.f32 %v410, 0.5
        %v475 = vmul.f32 %v411, 0.5
        %v476 = vmul.f32 %v412, 0.5
        %v477 = vmul.f32 %v413, 0.5
        %v478 = vmul.f32 %v414, 0.5
        %v479 = vmul.f32 %v415, 0.5
        %v480 = vmul.f32 %v416, 0.5
        %v481 = vmul.f32 %v417, 0.5
        %v482 = vmul.f32 %v418, 0.5
        %v483 = vmul.f32 %v419, 0.5
        %v484 = vmul.f32 %v420, 0.5
        %v485 = vmul.f32 %v421, 0.5
        %v486 = vmax.f32 %v422, %v423
        %v487 = vmax.f32 %v486, %v424
        %v488 = vmax.f32 %v487, %v425
        %489 = vmax.xlane.f32.xlu0 %v488
        %v490 = vpop.xlane.xlu0 %489
        %v491 = vmax.f32 %v426, %v427
        %v492 = vmax.f32 %v491, %v428
        %v493 = vmax.f32 %v492, %v429
        %494 = vmax.xlane.f32.xlu0 %v493
        %v495 = vpop.xlane.xlu0 %494
        %v496 = vmax.f32 %v430, %v431
        %v497 = vmax.f32 %v496, %v432
        %v498 = vmax.f32 %v497, %v433
        %499 = vmax.xlane.f32.xlu0 %v498
        %v500 = vpop.xlane.xlu0 %499
        %v501 = vmax.f32 %v434, %v435
        %v502 = vmax.f32 %v501, %v436
        %v503 = vmax.f32 %v502, %v437
        %504 = vmax.xlane.f32.xlu0 %v503
        %v505 = vpop.xlane.xlu0 %504
        %v506 = vmax.f32 %v438, %v439
        %v507 = vmax.f32 %v506, %v440
        %v508 = vmax.f32 %v507, %v441
        %509 = vmax.xlane.f32.xlu0 %v508
        %v510 = vpop.xlane.xlu0 %509
        %v511 = vmax.f32 %v442, %v443
        %v512 = vmax.f32 %v511, %v444
        %v513 = vmax.f32 %v512, %v445
        %514 = vmax.xlane.f32.xlu0 %v513
        %v515 = vpop.xlane.xlu0 %514
        %v516 = vmax.f32 %v446, %v447
        %v517 = vmax.f32 %v516, %v448
        %v518 = vmax.f32 %v517, %v449
        %519 = vmax.xlane.f32.xlu0 %v518
        %v520 = vpop.xlane.xlu0 %519
        %v521 = vmax.f32 %v450, %v451
        %v522 = vmax.f32 %v521, %v452
        %v523 = vmax.f32 %v522, %v453
        %524 = vmax.xlane.f32.xlu0 %v523
        %v525 = vpop.xlane.xlu0 %524
        %v526 = vmax.f32 %v454, %v455
        %v527 = vmax.f32 %v526, %v456
        %v528 = vmax.f32 %v527, %v457
        %529 = vmax.xlane.f32.xlu0 %v528
        %v530 = vpop.xlane.xlu0 %529
        %v531 = vmax.f32 %v458, %v459
        %v532 = vmax.f32 %v531, %v460
        %v533 = vmax.f32 %v532, %v461
        %534 = vmax.xlane.f32.xlu0 %v533
        %v535 = vpop.xlane.xlu0 %534
        %v536 = vmax.f32 %v462, %v463
        %v537 = vmax.f32 %v536, %v464
        %v538 = vmax.f32 %v537, %v465
        %539 = vmax.xlane.f32.xlu0 %v538
        %v540 = vpop.xlane.xlu0 %539
        %v541 = vmax.f32 %v466, %v467
        %v542 = vmax.f32 %v541, %v468
        %v543 = vmax.f32 %v542, %v469
        %544 = vmax.xlane.f32.xlu0 %v543
        %v545 = vpop.xlane.xlu0 %544
        %v546 = vmax.f32 %v470, %v471
        %v547 = vmax.f32 %v546, %v472
        %v548 = vmax.f32 %v547, %v473
        %549 = vmax.xlane.f32.xlu0 %v548
        %v550 = vpop.xlane.xlu0 %549
        %v551 = vmax.f32 %v474, %v475
        %v552 = vmax.f32 %v551, %v476
        %v553 = vmax.f32 %v552, %v477
        %554 = vmax.xlane.f32.xlu0 %v553
        %v555 = vpop.xlane.xlu0 %554
        %v556 = vmax.f32 %v478, %v479
        %v557 = vmax.f32 %v556, %v480
        %v558 = vmax.f32 %v557, %v481
        %559 = vmax.xlane.f32.xlu0 %v558
        %v560 = vpop.xlane.xlu0 %559
        %v561 = vmax.f32 %v482, %v483
        %v562 = vmax.f32 %v561, %v484
        %v563 = vmax.f32 %v562, %v485
        %564 = vmax.xlane.f32.xlu0 %v563
        %v565 = vpop.xlane.xlu0 %564
        %v566 = vsub.f32 %v422, %v490
        %v567 = vsub.f32 %v423, %v490
        %v568 = vsub.f32 %v424, %v490
        %v569 = vsub.f32 %v425, %v490
        %v570 = vsub.f32 %v426, %v495
        %v571 = vsub.f32 %v427, %v495
        %v572 = vsub.f32 %v428, %v495
        %v573 = vsub.f32 %v429, %v495
        %v574 = vsub.f32 %v430, %v500
        %v575 = vsub.f32 %v431, %v500
        %v576 = vsub.f32 %v432, %v500
        %v577 = vsub.f32 %v433, %v500
        %v578 = vsub.f32 %v434, %v505
        %v579 = vsub.f32 %v435, %v505
        %v580 = vsub.f32 %v436, %v505
        %v581 = vsub.f32 %v437, %v505
        %v582 = vsub.f32 %v438, %v510
        %v583 = vsub.f32 %v439, %v510
        %v584 = vsub.f32 %v440, %v510
        %v585 = vsub.f32 %v441, %v510
        %v586 = vsub.f32 %v442, %v515
        %v587 = vsub.f32 %v443, %v515
        %v588 = vsub.f32 %v444, %v515
        %v589 = vsub.f32 %v445, %v515
        %v590 = vsub.f32 %v446, %v520
        %v591 = vsub.f32 %v447, %v520
        %v592 = vsub.f32 %v448, %v520
        %v593 = vsub.f32 %v449, %v520
        %v594 = vsub.f32 %v450, %v525
        %v595 = vsub.f32 %v451, %v525
        %v596 = vsub.f32 %v452, %v525
        %v597 = vsub.f32 %v453, %v525
        %v598 = vsub.f32 %v454, %v530
        %v599 = vsub.f32 %v455, %v530
        %v600 = vsub.f32 %v456, %v530
        %v601 = vsub.f32 %v457, %v530
        %v602 = vsub.f32 %v458, %v535
        %v603 = vsub.f32 %v459, %v535
        %v604 = vsub.f32 %v460, %v535
        %v605 = vsub.f32 %v461, %v535
        %v606 = vsub.f32 %v462, %v540
        %v607 = vsub.f32 %v463, %v540
        %v608 = vsub.f32 %v464, %v540
        %v609 = vsub.f32 %v465, %v540
        %v610 = vsub.f32 %v466, %v545
        %v611 = vsub.f32 %v467, %v545
        %v612 = vsub.f32 %v468, %v545
        %v613 = vsub.f32 %v469, %v545
        %v614 = vsub.f32 %v470, %v550
        %v615 = vsub.f32 %v471, %v550
        %v616 = vsub.f32 %v472, %v550
        %v617 = vsub.f32 %v473, %v550
        %v618 = vsub.f32 %v474, %v555
        %v619 = vsub.f32 %v475, %v555
        %v620 = vsub.f32 %v476, %v555
        %v621 = vsub.f32 %v477, %v555
        %v622 = vsub.f32 %v478, %v560
        %v623 = vsub.f32 %v479, %v560
        %v624 = vsub.f32 %v480, %v560
        %v625 = vsub.f32 %v481, %v560
        %v626 = vsub.f32 %v482, %v565
        %v627 = vsub.f32 %v483, %v565
        %v628 = vsub.f32 %v484, %v565
        %v629 = vsub.f32 %v485, %v565
        %v630 = vmul.f32 %v566, 1.442695
        %v631 = vpow.pop %v630
        %v632 = vmul.f32 %v567, 1.442695
        %v633 = vpow.pop %v632
        %v634 = vmul.f32 %v568, 1.442695
        %v635 = vpow.pop %v634
        %v636 = vmul.f32 %v569, 1.442695
        %v637 = vpow.pop %v636
        %v638 = vmul.f32 %v570, 1.442695
        %v639 = vpow.pop %v638
        %v640 = vmul.f32 %v571, 1.442695
        %v641 = vpow.pop %v640
        %v642 = vmul.f32 %v572, 1.442695
        %v643 = vpow.pop %v642
        %v644 = vmul.f32 %v573, 1.442695
        %v645 = vpow.pop %v644
        %v646 = vmul.f32 %v574, 1.442695
        %v647 = vpow.pop %v646
        %v648 = vmul.f32 %v575, 1.442695
        %v649 = vpow.pop %v648
        %v650 = vmul.f32 %v576, 1.442695
        %v651 = vpow.pop %v650
        %v652 = vmul.f32 %v577, 1.442695
        %v653 = vpow.pop %v652
        %v654 = vmul.f32 %v578, 1.442695
        %v655 = vpow.pop %v654
        %v656 = vmul.f32 %v579, 1.442695
        %v657 = vpow.pop %v656
        %v658 = vmul.f32 %v580, 1.442695
        %v659 = vpow.pop %v658
        %v660 = vmul.f32 %v581, 1.442695
        %v661 = vpow.pop %v660
        %v662 = vmul.f32 %v582, 1.442695
        %v663 = vpow.pop %v662
        %v664 = vmul.f32 %v583, 1.442695
        %v665 = vpow.pop %v664
        %v666 = vmul.f32 %v584, 1.442695
        %v667 = vpow.pop %v666
        %v668 = vmul.f32 %v585, 1.442695
        %v669 = vpow.pop %v668
        %v670 = vmul.f32 %v586, 1.442695
        %v671 = vpow.pop %v670
        %v672 = vmul.f32 %v587, 1.442695
        %v673 = vpow.pop %v672
        %v674 = vmul.f32 %v588, 1.442695
        %v675 = vpow.pop %v674
        %v676 = vmul.f32 %v589, 1.442695
        %v677 = vpow.pop %v676
        %v678 = vmul.f32 %v590, 1.442695
        %v679 = vpow.pop %v678
        %v680 = vmul.f32 %v591, 1.442695
        %v681 = vpow.pop %v680
        %v682 = vmul.f32 %v592, 1.442695
        %v683 = vpow.pop %v682
        %v684 = vmul.f32 %v593, 1.442695
        %v685 = vpow.pop %v684
        %v686 = vmul.f32 %v594, 1.442695
        %v687 = vpow.pop %v686
        %v688 = vmul.f32 %v595, 1.442695
        %v689 = vpow.pop %v688
        %v690 = vmul.f32 %v596, 1.442695
        %v691 = vpow.pop %v690
        %v692 = vmul.f32 %v597, 1.442695
        %v693 = vpow.pop %v692
        %v694 = vmul.f32 %v598, 1.442695
        %v695 = vpow.pop %v694
        %v696 = vmul.f32 %v599, 1.442695
        %v697 = vpow.pop %v696
        %v698 = vmul.f32 %v600, 1.442695
        %v699 = vpow.pop %v698
        %v700 = vmul.f32 %v601, 1.442695
        %v701 = vpow.pop %v700
        %v702 = vmul.f32 %v602, 1.442695
        %v703 = vpow.pop %v702
        %v704 = vmul.f32 %v603, 1.442695
        %v705 = vpow.pop %v704
        %v706 = vmul.f32 %v604, 1.442695
        %v707 = vpow.pop %v706
        %v708 = vmul.f32 %v605, 1.442695
        %v709 = vpow.pop %v708
        %v710 = vmul.f32 %v606, 1.442695
        %v711 = vpow.pop %v710
        %v712 = vmul.f32 %v607, 1.442695
        %v713 = vpow.pop %v712
        %v714 = vmul.f32 %v608, 1.442695
        %v715 = vpow.pop %v714
        %v716 = vmul.f32 %v609, 1.442695
        %v717 = vpow.pop %v716
        %v718 = vmul.f32 %v610, 1.442695
        %v719 = vpow.pop %v718
        %v720 = vmul.f32 %v611, 1.442695
        %v721 = vpow.pop %v720
        %v722 = vmul.f32 %v612, 1.442695
        %v723 = vpow.pop %v722
        %v724 = vmul.f32 %v613, 1.442695
        %v725 = vpow.pop %v724
        %v726 = vmul.f32 %v614, 1.442695
        %v727 = vpow.pop %v726
        %v728 = vmul.f32 %v615, 1.442695
        %v729 = vpow.pop %v728
        %v730 = vmul.f32 %v616, 1.442695
        %v731 = vpow.pop %v730
        %v732 = vmul.f32 %v617, 1.442695
        %v733 = vpow.pop %v732
        %v734 = vmul.f32 %v618, 1.442695
        %v735 = vpow.pop %v734
        %v736 = vmul.f32 %v619, 1.442695
        %v737 = vpow.pop %v736
        %v738 = vmul.f32 %v620, 1.442695
        %v739 = vpow.pop %v738
        %v740 = vmul.f32 %v621, 1.442695
        %v741 = vpow.pop %v740
        %v742 = vmul.f32 %v622, 1.442695
        %v743 = vpow.pop %v742
        %v744 = vmul.f32 %v623, 1.442695
        %v745 = vpow.pop %v744
        %v746 = vmul.f32 %v624, 1.442695
        %v747 = vpow.pop %v746
        %v748 = vmul.f32 %v625, 1.442695
        %v749 = vpow.pop %v748
        %v750 = vmul.f32 %v626, 1.442695
        %v751 = vpow.pop %v750
        %v752 = vmul.f32 %v627, 1.442695
        %v753 = vpow.pop %v752
        %v754 = vmul.f32 %v628, 1.442695
        %v755 = vpow.pop %v754
        %v756 = vmul.f32 %v629, 1.442695
        %v757 = vpow.pop %v756
        %v758 = vadd.f32 %v631, %v633
        %v759 = vadd.f32 %v758, %v635
        %v760 = vadd.f32 %v759, %v637
        %761 = vadd.xlane.f32.xlu0 %v760
        %v762 = vpop.xlane.xlu0 %761
        %v763 = vadd.f32 %v639, %v641
        %v764 = vadd.f32 %v763, %v643
        %v765 = vadd.f32 %v764, %v645
        %766 = vadd.xlane.f32.xlu0 %v765
        %v767 = vpop.xlane.xlu0 %766
        %v768 = vadd.f32 %v647, %v649
        %v769 = vadd.f32 %v768, %v651
        %v770 = vadd.f32 %v769, %v653
        %771 = vadd.xlane.f32.xlu0 %v770
        %v772 = vpop.xlane.xlu0 %771
        %v773 = vadd.f32 %v655, %v657
        %v774 = vadd.f32 %v773, %v659
        %v775 = vadd.f32 %v774, %v661
        %776 = vadd.xlane.f32.xlu0 %v775
        %v777 = vpop.xlane.xlu0 %776
        %v778 = vadd.f32 %v663, %v665
        %v779 = vadd.f32 %v778, %v667
        %v780 = vadd.f32 %v779, %v669
        %781 = vadd.xlane.f32.xlu0 %v780
        %v782 = vpop.xlane.xlu0 %781
        %v783 = vadd.f32 %v671, %v673
        %v784 = vadd.f32 %v783, %v675
        %v785 = vadd.f32 %v784, %v677
        %786 = vadd.xlane.f32.xlu0 %v785
        %v787 = vpop.xlane.xlu0 %786
        %v788 = vadd.f32 %v679, %v681
        %v789 = vadd.f32 %v788, %v683
        %v790 = vadd.f32 %v789, %v685
        %791 = vadd.xlane.f32.xlu0 %v790
        %v792 = vpop.xlane.xlu0 %791
        %v793 = vadd.f32 %v687, %v689
        %v794 = vadd.f32 %v793, %v691
        %v795 = vadd.f32 %v794, %v693
        %796 = vadd.xlane.f32.xlu0 %v795
        %v797 = vpop.xlane.xlu0 %796
        %v798 = vadd.f32 %v695, %v697
        %v799 = vadd.f32 %v798, %v699
        %v800 = vadd.f32 %v799, %v701
        %801 = vadd.xlane.f32.xlu0 %v800
        %v802 = vpop.xlane.xlu0 %801
        %v803 = vadd.f32 %v703, %v705
        %v804 = vadd.f32 %v803, %v707
        %v805 = vadd.f32 %v804, %v709
        %806 = vadd.xlane.f32.xlu0 %v805
        %v807 = vpop.xlane.xlu0 %806
        %v808 = vadd.f32 %v711, %v713
        %v809 = vadd.f32 %v808, %v715
        %v810 = vadd.f32 %v809, %v717
        %811 = vadd.xlane.f32.xlu0 %v810
        %v812 = vpop.xlane.xlu0 %811
        %v813 = vadd.f32 %v719, %v721
        %v814 = vadd.f32 %v813, %v723
        %v815 = vadd.f32 %v814, %v725
        %816 = vadd.xlane.f32.xlu0 %v815
        %v817 = vpop.xlane.xlu0 %816
        %v818 = vadd.f32 %v727, %v729
        %v819 = vadd.f32 %v818, %v731
        %v820 = vadd.f32 %v819, %v733
        %821 = vadd.xlane.f32.xlu0 %v820
        %v822 = vpop.xlane.xlu0 %821
        %v823 = vadd.f32 %v735, %v737
        %v824 = vadd.f32 %v823, %v739
        %v825 = vadd.f32 %v824, %v741
        %826 = vadd.xlane.f32.xlu0 %v825
        %v827 = vpop.xlane.xlu0 %826
        %v828 = vadd.f32 %v743, %v745
        %v829 = vadd.f32 %v828, %v747
        %v830 = vadd.f32 %v829, %v749
        %831 = vadd.xlane.f32.xlu0 %v830
        %v832 = vpop.xlane.xlu0 %831
        %v833 = vadd.f32 %v751, %v753
        %v834 = vadd.f32 %v833, %v755
        %v835 = vadd.f32 %v834, %v757
        %836 = vadd.xlane.f32.xlu0 %v835
        %v837 = vpop.xlane.xlu0 %836
        %v838 = vmax.f32 %v294, %v295
        %v839 = vmax.f32 %v838, %v296
        %v840 = vmax.f32 %v839, %v297
        %841 = vmax.xlane.f32.xlu0 %v840
        %v842 = vpop.xlane.xlu0 %841
        %v843 = vmax.f32 %v298, %v299
        %v844 = vmax.f32 %v843, %v300
        %v845 = vmax.f32 %v844, %v301
        %846 = vmax.xlane.f32.xlu0 %v845
        %v847 = vpop.xlane.xlu0 %846
        %v848 = vmax.f32 %v302, %v303
        %v849 = vmax.f32 %v848, %v304
        %v850 = vmax.f32 %v849, %v305
        %851 = vmax.xlane.f32.xlu0 %v850
        %v852 = vpop.xlane.xlu0 %851
        %v853 = vmax.f32 %v306, %v307
        %v854 = vmax.f32 %v853, %v308
        %v855 = vmax.f32 %v854, %v309
        %856 = vmax.xlane.f32.xlu0 %v855
        %v857 = vpop.xlane.xlu0 %856
        %v858 = vmax.f32 %v310, %v311
        %v859 = vmax.f32 %v858, %v312
        %v860 = vmax.f32 %v859, %v313
        %861 = vmax.xlane.f32.xlu0 %v860
        %v862 = vpop.xlane.xlu0 %861
        %v863 = vmax.f32 %v314, %v315
        %v864 = vmax.f32 %v863, %v316
        %v865 = vmax.f32 %v864, %v317
        %866 = vmax.xlane.f32.xlu0 %v865
        %v867 = vpop.xlane.xlu0 %866
        %v868 = vmax.f32 %v318, %v319
        %v869 = vmax.f32 %v868, %v320
        %v870 = vmax.f32 %v869, %v321
        %871 = vmax.xlane.f32.xlu0 %v870
        %v872 = vpop.xlane.xlu0 %871
        %v873 = vmax.f32 %v322, %v323
        %v874 = vmax.f32 %v873, %v324
        %v875 = vmax.f32 %v874, %v325
        %876 = vmax.xlane.f32.xlu0 %v875
        %v877 = vpop.xlane.xlu0 %876
        %v878 = vmax.f32 %v326, %v327
        %v879 = vmax.f32 %v878, %v328
        %v880 = vmax.f32 %v879, %v329
        %881 = vmax.xlane.f32.xlu0 %v880
        %v882 = vpop.xlane.xlu0 %881
        %v883 = vmax.f32 %v330, %v331
        %v884 = vmax.f32 %v883, %v332
        %v885 = vmax.f32 %v884, %v333
        %886 = vmax.xlane.f32.xlu0 %v885
        %v887 = vpop.xlane.xlu0 %886
        %v888 = vmax.f32 %v334, %v335
        %v889 = vmax.f32 %v888, %v336
        %v890 = vmax.f32 %v889, %v337
        %891 = vmax.xlane.f32.xlu0 %v890
        %v892 = vpop.xlane.xlu0 %891
        %v893 = vmax.f32 %v338, %v339
        %v894 = vmax.f32 %v893, %v340
        %v895 = vmax.f32 %v894, %v341
        %896 = vmax.xlane.f32.xlu0 %v895
        %v897 = vpop.xlane.xlu0 %896
        %v898 = vmax.f32 %v342, %v343
        %v899 = vmax.f32 %v898, %v344
        %v900 = vmax.f32 %v899, %v345
        %901 = vmax.xlane.f32.xlu0 %v900
        %v902 = vpop.xlane.xlu0 %901
        %v903 = vmax.f32 %v346, %v347
        %v904 = vmax.f32 %v903, %v348
        %v905 = vmax.f32 %v904, %v349
        %906 = vmax.xlane.f32.xlu0 %v905
        %v907 = vpop.xlane.xlu0 %906
        %v908 = vmax.f32 %v350, %v351
        %v909 = vmax.f32 %v908, %v352
        %v910 = vmax.f32 %v909, %v353
        %911 = vmax.xlane.f32.xlu0 %v910
        %v912 = vpop.xlane.xlu0 %911
        %v913 = vmax.f32 %v354, %v355
        %v914 = vmax.f32 %v913, %v356
        %v915 = vmax.f32 %v914, %v357
        %916 = vmax.xlane.f32.xlu0 %v915
        %v917 = vpop.xlane.xlu0 %916
        %v918 = vsub.f32 %v294, %v842
        %v919 = vsub.f32 %v295, %v842
        %v920 = vsub.f32 %v296, %v842
        %v921 = vsub.f32 %v297, %v842
        %v922 = vsub.f32 %v298, %v847
        %v923 = vsub.f32 %v299, %v847
        %v924 = vsub.f32 %v300, %v847
        %v925 = vsub.f32 %v301, %v847
        %v926 = vsub.f32 %v302, %v852
        %v927 = vsub.f32 %v303, %v852
        %v928 = vsub.f32 %v304, %v852
        %v929 = vsub.f32 %v305, %v852
        %v930 = vsub.f32 %v306, %v857
        %v931 = vsub.f32 %v307, %v857
        %v932 = vsub.f32 %v308, %v857
        %v933 = vsub.f32 %v309, %v857
        %v934 = vsub.f32 %v310, %v862
        %v935 = vsub.f32 %v311, %v862
        %v936 = vsub.f32 %v312, %v862
        %v937 = vsub.f32 %v313, %v862
        %v938 = vsub.f32 %v314, %v867
        %v939 = vsub.f32 %v315, %v867
        %v940 = vsub.f32 %v316, %v867
        %v941 = vsub.f32 %v317, %v867
        %v942 = vsub.f32 %v318, %v872
        %v943 = vsub.f32 %v319, %v872
        %v944 = vsub.f32 %v320, %v872
        %v945 = vsub.f32 %v321, %v872
        %v946 = vsub.f32 %v322, %v877
        %v947 = vsub.f32 %v323, %v877
        %v948 = vsub.f32 %v324, %v877
        %v949 = vsub.f32 %v325, %v877
        %v950 = vsub.f32 %v326, %v882
        %v951 = vsub.f32 %v327, %v882
        %v952 = vsub.f32 %v328, %v882
        %v953 = vsub.f32 %v329, %v882
        %v954 = vsub.f32 %v330, %v887
        %v955 = vsub.f32 %v331, %v887
        %v956 = vsub.f32 %v332, %v887
        %v957 = vsub.f32 %v333, %v887
        %v958 = vsub.f32 %v334, %v892
        %v959 = vsub.f32 %v335, %v892
        %v960 = vsub.f32 %v336, %v892
        %v961 = vsub.f32 %v337, %v892
        %v962 = vsub.f32 %v338, %v897
        %v963 = vsub.f32 %v339, %v897
        %v964 = vsub.f32 %v340, %v897
        %v965 = vsub.f32 %v341, %v897
        %v966 = vsub.f32 %v342, %v902
        %v967 = vsub.f32 %v343, %v902
        %v968 = vsub.f32 %v344, %v902
        %v969 = vsub.f32 %v345, %v902
        %v970 = vsub.f32 %v346, %v907
        %v971 = vsub.f32 %v347, %v907
        %v972 = vsub.f32 %v348, %v907
        %v973 = vsub.f32 %v349, %v907
        %v974 = vsub.f32 %v350, %v912
        %v975 = vsub.f32 %v351, %v912
        %v976 = vsub.f32 %v352, %v912
        %v977 = vsub.f32 %v353, %v912
        %v978 = vsub.f32 %v354, %v917
        %v979 = vsub.f32 %v355, %v917
        %v980 = vsub.f32 %v356, %v917
        %v981 = vsub.f32 %v357, %v917
        %v982 = vmul.f32 %v918, 1.442695
        %v983 = vpow.pop %v982
        %v984 = vmul.f32 %v919, 1.442695
        %v985 = vpow.pop %v984
        %v986 = vmul.f32 %v920, 1.442695
        %v987 = vpow.pop %v986
        %v988 = vmul.f32 %v921, 1.442695
        %v989 = vpow.pop %v988
        %v990 = vmul.f32 %v922, 1.442695
        %v991 = vpow.pop %v990
        %v992 = vmul.f32 %v923, 1.442695
        %v993 = vpow.pop %v992
        %v994 = vmul.f32 %v924, 1.442695
        %v995 = vpow.pop %v994
        %v996 = vmul.f32 %v925, 1.442695
        %v997 = vpow.pop %v996
        %v998 = vmul.f32 %v926, 1.442695
        %v999 = vpow.pop %v998
        %v1000 = vmul.f32 %v927, 1.442695
        %v1001 = vpow.pop %v1000
        %v1002 = vmul.f32 %v928, 1.442695
        %v1003 = vpow.pop %v1002
        %v1004 = vmul.f32 %v929, 1.442695
        %v1005 = vpow.pop %v1004
        %v1006 = vmul.f32 %v930, 1.442695
        %v1007 = vpow.pop %v1006
        %v1008 = vmul.f32 %v931, 1.442695
        %v1009 = vpow.pop %v1008
        %v1010 = vmul.f32 %v932, 1.442695
        %v1011 = vpow.pop %v1010
        %v1012 = vmul.f32 %v933, 1.442695
        %v1013 = vpow.pop %v1012
        %v1014 = vmul.f32 %v934, 1.442695
        %v1015 = vpow.pop %v1014
        %v1016 = vmul.f32 %v935, 1.442695
        %v1017 = vpow.pop %v1016
        %v1018 = vmul.f32 %v936, 1.442695
        %v1019 = vpow.pop %v1018
        %v1020 = vmul.f32 %v937, 1.442695
        %v1021 = vpow.pop %v1020
        %v1022 = vmul.f32 %v938, 1.442695
        %v1023 = vpow.pop %v1022
        %v1024 = vmul.f32 %v939, 1.442695
        %v1025 = vpow.pop %v1024
        %v1026 = vmul.f32 %v940, 1.442695
        %v1027 = vpow.pop %v1026
        %v1028 = vmul.f32 %v941, 1.442695
        %v1029 = vpow.pop %v1028
        %v1030 = vmul.f32 %v942, 1.442695
        %v1031 = vpow.pop %v1030
        %v1032 = vmul.f32 %v943, 1.442695
        %v1033 = vpow.pop %v1032
        %v1034 = vmul.f32 %v944, 1.442695
        %v1035 = vpow.pop %v1034
        %v1036 = vmul.f32 %v945, 1.442695
        %v1037 = vpow.pop %v1036
        %v1038 = vmul.f32 %v946, 1.442695
        %v1039 = vpow.pop %v1038
        %v1040 = vmul.f32 %v947, 1.442695
        %v1041 = vpow.pop %v1040
        %v1042 = vmul.f32 %v948, 1.442695
        %v1043 = vpow.pop %v1042
        %v1044 = vmul.f32 %v949, 1.442695
        %v1045 = vpow.pop %v1044
        %v1046 = vmul.f32 %v950, 1.442695
        %v1047 = vpow.pop %v1046
        %v1048 = vmul.f32 %v951, 1.442695
        %v1049 = vpow.pop %v1048
        %v1050 = vmul.f32 %v952, 1.442695
        %v1051 = vpow.pop %v1050
        %v1052 = vmul.f32 %v953, 1.442695
        %v1053 = vpow.pop %v1052
        %v1054 = vmul.f32 %v954, 1.442695
        %v1055 = vpow.pop %v1054
        %v1056 = vmul.f32 %v955, 1.442695
        %v1057 = vpow.pop %v1056
        %v1058 = vmul.f32 %v956, 1.442695
        %v1059 = vpow.pop %v1058
        %v1060 = vmul.f32 %v957, 1.442695
        %v1061 = vpow.pop %v1060
        %v1062 = vmul.f32 %v958, 1.442695
        %v1063 = vpow.pop %v1062
        %v1064 = vmul.f32 %v959, 1.442695
        %v1065 = vpow.pop %v1064
        %v1066 = vmul.f32 %v960, 1.442695
        %v1067 = vpow.pop %v1066
        %v1068 = vmul.f32 %v961, 1.442695
        %v1069 = vpow.pop %v1068
        %v1070 = vmul.f32 %v962, 1.442695
        %v1071 = vpow.pop %v1070
        %v1072 = vmul.f32 %v963, 1.442695
        %v1073 = vpow.pop %v1072
        %v1074 = vmul.f32 %v964, 1.442695
        %v1075 = vpow.pop %v1074
        %v1076 = vmul.f32 %v965, 1.442695
        %v1077 = vpow.pop %v1076
        %v1078 = vmul.f32 %v966, 1.442695
        %v1079 = vpow.pop %v1078
        %v1080 = vmul.f32 %v967, 1.442695
        %v1081 = vpow.pop %v1080
        %v1082 = vmul.f32 %v968, 1.442695
        %v1083 = vpow.pop %v1082
        %v1084 = vmul.f32 %v969, 1.442695
        %v1085 = vpow.pop %v1084
        %v1086 = vmul.f32 %v970, 1.442695
        %v1087 = vpow.pop %v1086
        %v1088 = vmul.f32 %v971, 1.442695
        %v1089 = vpow.pop %v1088
        %v1090 = vmul.f32 %v972, 1.442695
        %v1091 = vpow.pop %v1090
        %v1092 = vmul.f32 %v973, 1.442695
        %v1093 = vpow.pop %v1092
        %v1094 = vmul.f32 %v974, 1.442695
        %v1095 = vpow.pop %v1094
        %v1096 = vmul.f32 %v975, 1.442695
        %v1097 = vpow.pop %v1096
        %v1098 = vmul.f32 %v976, 1.442695
        %v1099 = vpow.pop %v1098
        %v1100 = vmul.f32 %v977, 1.442695
        %v1101 = vpow.pop %v1100
        %v1102 = vmul.f32 %v978, 1.442695
        %v1103 = vpow.pop %v1102
        %v1104 = vmul.f32 %v979, 1.442695
        %v1105 = vpow.pop %v1104
        %v1106 = vmul.f32 %v980, 1.442695
        %v1107 = vpow.pop %v1106
        %v1108 = vmul.f32 %v981, 1.442695
        %v1109 = vpow.pop %v1108
        %v1110 = vadd.f32 %v983, %v985
        %v1111 = vadd.f32 %v1110, %v987
        %v1112 = vadd.f32 %v1111, %v989
        %1113 = vadd.xlane.f32.xlu0 %v1112
        %v1114 = vpop.xlane.xlu0 %1113
        %v1115 = vadd.f32 %v991, %v993
        %v1116 = vadd.f32 %v1115, %v995
        %v1117 = vadd.f32 %v1116, %v997
        %1118 = vadd.xlane.f32.xlu0 %v1117
        %v1119 = vpop.xlane.xlu0 %1118
        %v1120 = vadd.f32 %v999, %v1001
        %v1121 = vadd.f32 %v1120, %v1003
        %v1122 = vadd.f32 %v1121, %v1005
        %1123 = vadd.xlane.f32.xlu0 %v1122
        %v1124 = vpop.xlane.xlu0 %1123
        %v1125 = vadd.f32 %v1007, %v1009
        %v1126 = vadd.f32 %v1125, %v1011
        %v1127 = vadd.f32 %v1126, %v1013
        %1128 = vadd.xlane.f32.xlu0 %v1127
        %v1129 = vpop.xlane.xlu0 %1128
        %v1130 = vadd.f32 %v1015, %v1017
        %v1131 = vadd.f32 %v1130, %v1019
        %v1132 = vadd.f32 %v1131, %v1021
        %1133 = vadd.xlane.f32.xlu0 %v1132
        %v1134 = vpop.xlane.xlu0 %1133
        %v1135 = vadd.f32 %v1023, %v1025
        %v1136 = vadd.f32 %v1135, %v1027
        %v1137 = vadd.f32 %v1136, %v1029
        %1138 = vadd.xlane.f32.xlu0 %v1137
        %v1139 = vpop.xlane.xlu0 %1138
        %v1140 = vadd.f32 %v1031, %v1033
        %v1141 = vadd.f32 %v1140, %v1035
        %v1142 = vadd.f32 %v1141, %v1037
        %1143 = vadd.xlane.f32.xlu0 %v1142
        %v1144 = vpop.xlane.xlu0 %1143
        %v1145 = vadd.f32 %v1039, %v1041
        %v1146 = vadd.f32 %v1145, %v1043
        %v1147 = vadd.f32 %v1146, %v1045
        %1148 = vadd.xlane.f32.xlu0 %v1147
        %v1149 = vpop.xlane.xlu0 %1148
        %v1150 = vadd.f32 %v1047, %v1049
        %v1151 = vadd.f32 %v1150, %v1051
        %v1152 = vadd.f32 %v1151, %v1053
        %1153 = vadd.xlane.f32.xlu0 %v1152
        %v1154 = vpop.xlane.xlu0 %1153
        %v1155 = vadd.f32 %v1055, %v1057
        %v1156 = vadd.f32 %v1155, %v1059
        %v1157 = vadd.f32 %v1156, %v1061
        %1158 = vadd.xlane.f32.xlu0 %v1157
        %v1159 = vpop.xlane.xlu0 %1158
        %v1160 = vadd.f32 %v1063, %v1065
        %v1161 = vadd.f32 %v1160, %v1067
        %v1162 = vadd.f32 %v1161, %v1069
        %1163 = vadd.xlane.f32.xlu0 %v1162
        %v1164 = vpop.xlane.xlu0 %1163
        %v1165 = vadd.f32 %v1071, %v1073
        %v1166 = vadd.f32 %v1165, %v1075
        %v1167 = vadd.f32 %v1166, %v1077
        %1168 = vadd.xlane.f32.xlu0 %v1167
        %v1169 = vpop.xlane.xlu0 %1168
        %v1170 = vadd.f32 %v1079, %v1081
        %v1171 = vadd.f32 %v1170, %v1083
        %v1172 = vadd.f32 %v1171, %v1085
        %1173 = vadd.xlane.f32.xlu0 %v1172
        %v1174 = vpop.xlane.xlu0 %1173
        %v1175 = vadd.f32 %v1087, %v1089
        %v1176 = vadd.f32 %v1175, %v1091
        %v1177 = vadd.f32 %v1176, %v1093
        %1178 = vadd.xlane.f32.xlu0 %v1177
        %v1179 = vpop.xlane.xlu0 %1178
        %v1180 = vadd.f32 %v1095, %v1097
        %v1181 = vadd.f32 %v1180, %v1099
        %v1182 = vadd.f32 %v1181, %v1101
        %1183 = vadd.xlane.f32.xlu0 %v1182
        %v1184 = vpop.xlane.xlu0 %1183
        %v1185 = vadd.f32 %v1103, %v1105
        %v1186 = vadd.f32 %v1185, %v1107
        %v1187 = vadd.f32 %v1186, %v1109
        %1188 = vadd.xlane.f32.xlu0 %v1187
        %v1189 = vpop.xlane.xlu0 %1188
        %v1190 = vlog2.pop %v1114
        %v1191 = vmul.f32 %v1190, 0.6931472
        %v1192 = vlog2.pop %v1119
        %v1193 = vmul.f32 %v1192, 0.6931472
        %v1194 = vlog2.pop %v1124
        %v1195 = vmul.f32 %v1194, 0.6931472
        %v1196 = vlog2.pop %v1129
        %v1197 = vmul.f32 %v1196, 0.6931472
        %v1198 = vlog2.pop %v1134
        %v1199 = vmul.f32 %v1198, 0.6931472
        %v1200 = vlog2.pop %v1139
        %v1201 = vmul.f32 %v1200, 0.6931472
        %v1202 = vlog2.pop %v1144
        %v1203 = vmul.f32 %v1202, 0.6931472
        %v1204 = vlog2.pop %v1149
        %v1205 = vmul.f32 %v1204, 0.6931472
        %v1206 = vlog2.pop %v1154
        %v1207 = vmul.f32 %v1206, 0.6931472
        %v1208 = vlog2.pop %v1159
        %v1209 = vmul.f32 %v1208, 0.6931472
        %v1210 = vlog2.pop %v1164
        %v1211 = vmul.f32 %v1210, 0.6931472
        %v1212 = vlog2.pop %v1169
        %v1213 = vmul.f32 %v1212, 0.6931472
        %v1214 = vlog2.pop %v1174
        %v1215 = vmul.f32 %v1214, 0.6931472
        %v1216 = vlog2.pop %v1179
        %v1217 = vmul.f32 %v1216, 0.6931472
        %v1218 = vlog2.pop %v1184
        %v1219 = vmul.f32 %v1218, 0.6931472
        %v1220 = vlog2.pop %v1189
        %v1221 = vmul.f32 %v1220, 0.6931472
        %v1222 = vadd.f32 %v842, %v1191
        %v1223 = vadd.f32 %v847, %v1193
        %v1224 = vadd.f32 %v852, %v1195
        %v1225 = vadd.f32 %v857, %v1197
        %v1226 = vadd.f32 %v862, %v1199
        %v1227 = vadd.f32 %v867, %v1201
        %v1228 = vadd.f32 %v872, %v1203
        %v1229 = vadd.f32 %v877, %v1205
        %v1230 = vadd.f32 %v882, %v1207
        %v1231 = vadd.f32 %v887, %v1209
        %v1232 = vadd.f32 %v892, %v1211
        %v1233 = vadd.f32 %v897, %v1213
        %v1234 = vadd.f32 %v902, %v1215
        %v1235 = vadd.f32 %v907, %v1217
        %v1236 = vadd.f32 %v912, %v1219
        %v1237 = vadd.f32 %v917, %v1221
        %v1238 = vmul.f32 %v631, %v294
        %v1239 = vmul.f32 %v633, %v295
        %v1240 = vmul.f32 %v635, %v296
        %v1241 = vmul.f32 %v637, %v297
        %v1242 = vmul.f32 %v639, %v298
        %v1243 = vmul.f32 %v641, %v299
        %v1244 = vmul.f32 %v643, %v300
        %v1245 = vmul.f32 %v645, %v301
        %v1246 = vmul.f32 %v647, %v302
        %v1247 = vmul.f32 %v649, %v303
        %v1248 = vmul.f32 %v651, %v304
        %v1249 = vmul.f32 %v653, %v305
        %v1250 = vmul.f32 %v655, %v306
        %v1251 = vmul.f32 %v657, %v307
        %v1252 = vmul.f32 %v659, %v308
        %v1253 = vmul.f32 %v661, %v309
        %v1254 = vmul.f32 %v663, %v310
        %v1255 = vmul.f32 %v665, %v311
        %v1256 = vmul.f32 %v667, %v312
        %v1257 = vmul.f32 %v669, %v313
        %v1258 = vmul.f32 %v671, %v314
        %v1259 = vmul.f32 %v673, %v315
        %v1260 = vmul.f32 %v675, %v316
        %v1261 = vmul.f32 %v677, %v317
        %v1262 = vmul.f32 %v679, %v318
        %v1263 = vmul.f32 %v681, %v319
        %v1264 = vmul.f32 %v683, %v320
        %v1265 = vmul.f32 %v685, %v321
        %v1266 = vmul.f32 %v687, %v322
        %v1267 = vmul.f32 %v689, %v323
        %v1268 = vmul.f32 %v691, %v324
        %v1269 = vmul.f32 %v693, %v325
        %v1270 = vmul.f32 %v695, %v326
        %v1271 = vmul.f32 %v697, %v327
        %v1272 = vmul.f32 %v699, %v328
        %v1273 = vmul.f32 %v701, %v329
        %v1274 = vmul.f32 %v703, %v330
        %v1275 = vmul.f32 %v705, %v331
        %v1276 = vmul.f32 %v707, %v332
        %v1277 = vmul.f32 %v709, %v333
        %v1278 = vmul.f32 %v711, %v334
        %v1279 = vmul.f32 %v713, %v335
        %v1280 = vmul.f32 %v715, %v336
        %v1281 = vmul.f32 %v717, %v337
        %v1282 = vmul.f32 %v719, %v338
        %v1283 = vmul.f32 %v721, %v339
        %v1284 = vmul.f32 %v723, %v340
        %v1285 = vmul.f32 %v725, %v341
        %v1286 = vmul.f32 %v727, %v342
        %v1287 = vmul.f32 %v729, %v343
        %v1288 = vmul.f32 %v731, %v344
        %v1289 = vmul.f32 %v733, %v345
        %v1290 = vmul.f32 %v735, %v346
        %v1291 = vmul.f32 %v737, %v347
        %v1292 = vmul.f32 %v739, %v348
        %v1293 = vmul.f32 %v741, %v349
        %v1294 = vmul.f32 %v743, %v350
        %v1295 = vmul.f32 %v745, %v351
        %v1296 = vmul.f32 %v747, %v352
        %v1297 = vmul.f32 %v749, %v353
        %v1298 = vmul.f32 %v751, %v354
        %v1299 = vmul.f32 %v753, %v355
        %v1300 = vmul.f32 %v755, %v356
        %v1301 = vmul.f32 %v757, %v357
        %v1302 = vadd.f32 %v1238, %v1239
        %v1303 = vadd.f32 %v1302, %v1240
        %v1304 = vadd.f32 %v1303, %v1241
        %1305 = vadd.xlane.f32.xlu0 %v1304
        %v1306 = vpop.xlane.xlu0 %1305
        %v1307 = vadd.f32 %v1242, %v1243
        %v1308 = vadd.f32 %v1307, %v1244
        %v1309 = vadd.f32 %v1308, %v1245
        %1310 = vadd.xlane.f32.xlu0 %v1309
        %v1311 = vpop.xlane.xlu0 %1310
        %v1312 = vadd.f32 %v1246, %v1247
        %v1313 = vadd.f32 %v1312, %v1248
        %v1314 = vadd.f32 %v1313, %v1249
        %1315 = vadd.xlane.f32.xlu0 %v1314
        %v1316 = vpop.xlane.xlu0 %1315
        %v1317 = vadd.f32 %v1250, %v1251
        %v1318 = vadd.f32 %v1317, %v1252
        %v1319 = vadd.f32 %v1318, %v1253
        %1320 = vadd.xlane.f32.xlu0 %v1319
        %v1321 = vpop.xlane.xlu0 %1320
        %v1322 = vadd.f32 %v1254, %v1255
        %v1323 = vadd.f32 %v1322, %v1256
        %v1324 = vadd.f32 %v1323, %v1257
        %1325 = vadd.xlane.f32.xlu0 %v1324
        %v1326 = vpop.xlane.xlu0 %1325
        %v1327 = vadd.f32 %v1258, %v1259
        %v1328 = vadd.f32 %v1327, %v1260
        %v1329 = vadd.f32 %v1328, %v1261
        %1330 = vadd.xlane.f32.xlu0 %v1329
        %v1331 = vpop.xlane.xlu0 %1330
        %v1332 = vadd.f32 %v1262, %v1263
        %v1333 = vadd.f32 %v1332, %v1264
        %v1334 = vadd.f32 %v1333, %v1265
        %1335 = vadd.xlane.f32.xlu0 %v1334
        %v1336 = vpop.xlane.xlu0 %1335
        %v1337 = vadd.f32 %v1266, %v1267
        %v1338 = vadd.f32 %v1337, %v1268
        %v1339 = vadd.f32 %v1338, %v1269
        %1340 = vadd.xlane.f32.xlu0 %v1339
        %v1341 = vpop.xlane.xlu0 %1340
        %v1342 = vadd.f32 %v1270, %v1271
        %v1343 = vadd.f32 %v1342, %v1272
        %v1344 = vadd.f32 %v1343, %v1273
        %1345 = vadd.xlane.f32.xlu0 %v1344
        %v1346 = vpop.xlane.xlu0 %1345
        %v1347 = vadd.f32 %v1274, %v1275
        %v1348 = vadd.f32 %v1347, %v1276
        %v1349 = vadd.f32 %v1348, %v1277
        %1350 = vadd.xlane.f32.xlu0 %v1349
        %v1351 = vpop.xlane.xlu0 %1350
        %v1352 = vadd.f32 %v1278, %v1279
        %v1353 = vadd.f32 %v1352, %v1280
        %v1354 = vadd.f32 %v1353, %v1281
        %1355 = vadd.xlane.f32.xlu0 %v1354
        %v1356 = vpop.xlane.xlu0 %1355
        %v1357 = vadd.f32 %v1282, %v1283
        %v1358 = vadd.f32 %v1357, %v1284
        %v1359 = vadd.f32 %v1358, %v1285
        %1360 = vadd.xlane.f32.xlu0 %v1359
        %v1361 = vpop.xlane.xlu0 %1360
        %v1362 = vadd.f32 %v1286, %v1287
        %v1363 = vadd.f32 %v1362, %v1288
        %v1364 = vadd.f32 %v1363, %v1289
        %1365 = vadd.xlane.f32.xlu0 %v1364
        %v1366 = vpop.xlane.xlu0 %1365
        %v1367 = vadd.f32 %v1290, %v1291
        %v1368 = vadd.f32 %v1367, %v1292
        %v1369 = vadd.f32 %v1368, %v1293
        %1370 = vadd.xlane.f32.xlu0 %v1369
        %v1371 = vpop.xlane.xlu0 %1370
        %v1372 = vadd.f32 %v1294, %v1295
        %v1373 = vadd.f32 %v1372, %v1296
        %v1374 = vadd.f32 %v1373, %v1297
        %1375 = vadd.xlane.f32.xlu0 %v1374
        %v1376 = vpop.xlane.xlu0 %1375
        %v1377 = vadd.f32 %v1298, %v1299
        %v1378 = vadd.f32 %v1377, %v1300
        %v1379 = vadd.f32 %v1378, %v1301
        %1380 = vadd.xlane.f32.xlu0 %v1379
        %v1381 = vpop.xlane.xlu0 %1380
        %v1382 = vrcp.pop %v762
        %v1383 = vmul.f32 %v1306, %v1382
        %v1384 = vrcp.pop %v767
        %v1385 = vmul.f32 %v1311, %v1384
        %v1386 = vrcp.pop %v772
        %v1387 = vmul.f32 %v1316, %v1386
        %v1388 = vrcp.pop %v777
        %v1389 = vmul.f32 %v1321, %v1388
        %v1390 = vrcp.pop %v782
        %v1391 = vmul.f32 %v1326, %v1390
        %v1392 = vrcp.pop %v787
        %v1393 = vmul.f32 %v1331, %v1392
        %v1394 = vrcp.pop %v792
        %v1395 = vmul.f32 %v1336, %v1394
        %v1396 = vrcp.pop %v797
        %v1397 = vmul.f32 %v1341, %v1396
        %v1398 = vrcp.pop %v802
        %v1399 = vmul.f32 %v1346, %v1398
        %v1400 = vrcp.pop %v807
        %v1401 = vmul.f32 %v1351, %v1400
        %v1402 = vrcp.pop %v812
        %v1403 = vmul.f32 %v1356, %v1402
        %v1404 = vrcp.pop %v817
        %v1405 = vmul.f32 %v1361, %v1404
        %v1406 = vrcp.pop %v822
        %v1407 = vmul.f32 %v1366, %v1406
        %v1408 = vrcp.pop %v827
        %v1409 = vmul.f32 %v1371, %v1408
        %v1410 = vrcp.pop %v832
        %v1411 = vmul.f32 %v1376, %v1410
        %v1412 = vrcp.pop %v837
        %v1413 = vmul.f32 %v1381, %v1412
        %v1414 = vsub.f32 %v1222, %v1383
        %v1415 = vsub.f32 %v1223, %v1385
        %v1416 = vsub.f32 %v1224, %v1387
        %v1417 = vsub.f32 %v1225, %v1389
        %v1418 = vsub.f32 %v1226, %v1391
        %v1419 = vsub.f32 %v1227, %v1393
        %v1420 = vsub.f32 %v1228, %v1395
        %v1421 = vsub.f32 %v1229, %v1397
        %v1422 = vsub.f32 %v1230, %v1399
        %v1423 = vsub.f32 %v1231, %v1401
        %v1424 = vsub.f32 %v1232, %v1403
        %v1425 = vsub.f32 %v1233, %v1405
        %v1426 = vsub.f32 %v1234, %v1407
        %v1427 = vsub.f32 %v1235, %v1409
        %v1428 = vsub.f32 %v1236, %v1411
        %v1429 = vsub.f32 %v1237, %v1413
        %s1430 = smul.u32 %s22, 128
        %v1431 = vlaneseq
        %v1432 = vshrl.u32 %v1431, 7
        %v1433 = vadd.s32 %v1432, 8
        %v1434 = vadd.s32 %v1432, 16
        %v1435 = vadd.s32 %v1432, 24
        %v1436 = vadd.s32 %v1432, 32
        %v1437 = vadd.s32 %v1432, 40
        %v1438 = vadd.s32 %v1432, 48
        %v1439 = vadd.s32 %v1432, 56
        %v1440 = vadd.s32 %v1432, 64
        %v1441 = vadd.s32 %v1432, 72
        %v1442 = vadd.s32 %v1432, 80
        %v1443 = vadd.s32 %v1432, 88
        %v1444 = vadd.s32 %v1432, 96
        %v1445 = vadd.s32 %v1432, 104
        %v1446 = vadd.s32 %v1432, 112
        %v1447 = vadd.s32 %v1432, 120
        %v1448 = vstv %s1430
        %v1449 = vadd.s32 %v1448, %v1432
        %v1450 = vadd.s32 %v1448, %v1433
        %v1451 = vadd.s32 %v1448, %v1434
        %v1452 = vadd.s32 %v1448, %v1435
        %v1453 = vadd.s32 %v1448, %v1436
        %v1454 = vadd.s32 %v1448, %v1437
        %v1455 = vadd.s32 %v1448, %v1438
        %v1456 = vadd.s32 %v1448, %v1439
        %v1457 = vadd.s32 %v1448, %v1440
        %v1458 = vadd.s32 %v1448, %v1441
        %v1459 = vadd.s32 %v1448, %v1442
        %v1460 = vadd.s32 %v1448, %v1443
        %v1461 = vadd.s32 %v1448, %v1444
        %v1462 = vadd.s32 %v1448, %v1445
        %v1463 = vadd.s32 %v1448, %v1446
        %v1464 = vadd.s32 %v1448, %v1447
        %vm1465 = vcmp.lt.s32.totalorder %v1449, 300
        %vm1466 = vcmp.lt.s32.totalorder %v1450, 300
        %vm1467 = vcmp.lt.s32.totalorder %v1451, 300
        %vm1468 = vcmp.lt.s32.totalorder %v1452, 300
        %vm1469 = vcmp.lt.s32.totalorder %v1453, 300
        %vm1470 = vcmp.lt.s32.totalorder %v1454, 300
        %vm1471 = vcmp.lt.s32.totalorder %v1455, 300
        %vm1472 = vcmp.lt.s32.totalorder %v1456, 300
        %vm1473 = vcmp.lt.s32.totalorder %v1457, 300
        %vm1474 = vcmp.lt.s32.totalorder %v1458, 300
        %vm1475 = vcmp.lt.s32.totalorder %v1459, 300
        %vm1476 = vcmp.lt.s32.totalorder %v1460, 300
        %vm1477 = vcmp.lt.s32.totalorder %v1461, 300
        %vm1478 = vcmp.lt.s32.totalorder %v1462, 300
        %vm1479 = vcmp.lt.s32.totalorder %v1463, 300
        %vm1480 = vcmp.lt.s32.totalorder %v1464, 300
        %v1481 = vsel %vm1465, %v1414, 0.0
        %v1482 = vsel %vm1466, %v1415, 0.0
        %v1483 = vsel %vm1467, %v1416, 0.0
        %v1484 = vsel %vm1468, %v1417, 0.0
        %v1485 = vsel %vm1469, %v1418, 0.0
        %v1486 = vsel %vm1470, %v1419, 0.0
        %v1487 = vsel %vm1471, %v1420, 0.0
        %v1488 = vsel %vm1472, %v1421, 0.0
        %v1489 = vsel %vm1473, %v1422, 0.0
        %v1490 = vsel %vm1474, %v1423, 0.0
        %v1491 = vsel %vm1475, %v1424, 0.0
        %v1492 = vsel %vm1476, %v1425, 0.0
        %v1493 = vsel %vm1477, %v1426, 0.0
        %v1494 = vsel %vm1478, %v1427, 0.0
        %v1495 = vsel %vm1479, %v1428, 0.0
        %v1496 = vsel %vm1480, %v1429, 0.0
        %vm1497 = vcmask 7168
        %v1498 = vsel %vm1497, %v1481, 0.0
        %v1499 = vsel %vm1497, %v1482, 0.0
        %v1500 = vadd.f32 %v1498, %v1499
        %v1501 = vsel %vm1497, %v1483, 0.0
        %v1502 = vadd.f32 %v1500, %v1501
        %v1503 = vsel %vm1497, %v1484, 0.0
        %v1504 = vadd.f32 %v1502, %v1503
        %v1505 = vsel %vm1497, %v1485, 0.0
        %v1506 = vadd.f32 %v1504, %v1505
        %v1507 = vsel %vm1497, %v1486, 0.0
        %v1508 = vadd.f32 %v1506, %v1507
        %v1509 = vsel %vm1497, %v1487, 0.0
        %v1510 = vadd.f32 %v1508, %v1509
        %v1511 = vsel %vm1497, %v1488, 0.0
        %v1512 = vadd.f32 %v1510, %v1511
        %v1513 = vsel %vm1497, %v1489, 0.0
        %v1514 = vadd.f32 %v1512, %v1513
        %v1515 = vsel %vm1497, %v1490, 0.0
        %v1516 = vadd.f32 %v1514, %v1515
        %v1517 = vsel %vm1497, %v1491, 0.0
        %v1518 = vadd.f32 %v1516, %v1517
        %v1519 = vsel %vm1497, %v1492, 0.0
        %v1520 = vadd.f32 %v1518, %v1519
        %v1521 = vsel %vm1497, %v1493, 0.0
        %v1522 = vadd.f32 %v1520, %v1521
        %v1523 = vsel %vm1497, %v1494, 0.0
        %v1524 = vadd.f32 %v1522, %v1523
        %v1525 = vsel %vm1497, %v1495, 0.0
        %v1526 = vadd.f32 %v1524, %v1525
        %v1527 = vsel %vm1497, %v1496, 0.0
        %v1528 = vadd.f32 %v1526, %v1527
        %1529 = vadd.xlane.f32.xlu0 %v1528
        %v1530 = vpop.xlane.xlu0 %1529
        %v1531 = vrot.slane %v1530, 4
        %v1532 = vadd.f32 %v1530, %v1531
        %v1533 = vrot.slane %v1532, 2
        %v1534 = vadd.f32 %v1532, %v1533
        %v1535 = vrot.slane %v1534, 1
        %v1536 = vadd.f32 %v1534, %v1535
        %s1537 = vtos %v1536
        %v1538 = vstv %s1537
        %1539 = vst [vmem:[%s217] sm:$0xff] %v1538
        %s1540 = sand.u32 %s82, 1
        %s1541 = scalar_lea.sflag [#allocation4], %s1540
        %s1542 = sand.u32 %s82, 1
        %s1543 = smul.addr %s1542, 8
        %s1544 = scalar_lea.vmem [#allocation7], %s1543
        // Predicated region
        $region37: #{tpu_custom_call.1} parent=27 // pred_check
          %p1545 = pneg %p92
        $region38: #{tpu_custom_call.1} parent=27 // pred_check_branch
          %1547 = sbr.rel (%p1545) target = $region40
        $region39: #{tpu_custom_call.1} parent=27 // pred_region
          %s1549 = ssub.s32 128, 128
          %1550 = vsyncadd %s1541, %s1549
          %s1551 = smul.addr %s22, 128
          %s1552 = scalar_lea.hbm %s2, %s1551
          %s1554 = sshll.u32 %s1544, 4
          %s1555 = int_to_ptr.vmem [resolvable:$true] %s1554
          %1557 = dma.vmem_to_hbm [thread:$0]  %s1555, 128, %s1552, %s1541
        $region40: #{tpu_custom_call.1} parent=27 // pred_fallthru
          _
      $region28: #{tpu_custom_call.1} parent=5 // pred_fallthru
        _
      %p1558 = scmp.le.s32.totalorder 2, %s17
      // Predicated region
      $region41: #{tpu_custom_call.1} parent=5 // pred_check
        %p1559 = pneg %p1558
      $region42: #{tpu_custom_call.1} parent=5 // pred_check_branch
        %1561 = sbr.rel (%p1559) target = $region44
      $region43: #{tpu_custom_call.1} parent=5 // pred_region
        %s1562 = ssub.s32 %s17, 2
        // Predicated region
        $region45: #{tpu_custom_call.1} parent=43 // pred_check
          %p1563 = pneg %p98
        $region46: #{tpu_custom_call.1} parent=43 // pred_check_branch
          %1565 = sbr.rel (%p1563) target = $region48
        $region47: #{tpu_custom_call.1} parent=43 // pred_region
          %s1566 = sand.u32 %s83, 1
          %s1567 = scalar_lea.sflag [#allocation4], %s1566
          %s1568 = sand.u32 %s83, 1
          %s1569 = smul.addr %s1568, 8
          %s1570 = scalar_lea.vmem [#allocation7], %s1569
          %1571 = dma.done %s1567, 128
        $region48: #{tpu_custom_call.1} parent=43 // pred_fallthru
          _
      $region44: #{tpu_custom_call.1} parent=5 // pred_fallthru
        _
    $region6: #{tpu_custom_call.1} parent=1 // loop_footer
      %s21 = sadd.s32 1, %s17
    $region7: #{tpu_custom_call.1} parent=1 // loop_footer_branch
      %16 = sbr.rel target = $region3
    $region8: #{tpu_custom_call.1} parent=1 // loop_exit
      _
    %1572 = vsyncpa [#allocation3], 1
    %s1573 = scalar_lea.sflag [#allocation3], 1
    %1574 = vsyncpa %s1573, 1
    %1575 = vsyncpa [#allocation6], 1
    %s1576 = scalar_lea.sflag [#allocation6], 1
    %1577 = vsyncpa %s1576, 1
    %1578 = vsyncpa [#allocation4], 1
    %s1579 = scalar_lea.sflag [#allocation4], 1
    %1580 = vsyncpa %s1579, 1

</llo_original>
